<compile_context>
chip_gen: v7x
topology: tpu7x:2x2x1
jax: 0.10.0
libtpu: 0.0.40
codegen_flags: <defaults>
</compile_context>

<pallas_src>
import functools

import jax
import jax.numpy as jnp
from jax.experimental import pallas as pl
from jax.experimental.pallas import tpu as pltpu


# ---------------------------------------------------------------------------
# Fused Pallas kernel
# ---------------------------------------------------------------------------
def _fused_forward_kernel(n_layers, *refs):
    """Fused StockLSTMClassifier forward.

    refs layout (inputs, then outputs):
      x                          (B, T, F)     batch_first, as given
      layer 0: w_ih0_T, w_hh0_T, b0            (F, 4H), (H, 4H), (1, 4H)
      layers l>=1: w_stack_l, b_l              (2H, 4H), (1, 4H)
      h0, c0                     (B, L*H)      == (B, L, H) memory order
      fc_w                       (T, H)        reshaped from (1, T*H)
      fc_b                       (1, 1)
      out                        (B, 1)
      h_n, c_n                   (B, L*H)
    """
    x_ref = refs[0]
    wih0_ref, whh0_ref, b0_ref = refs[1:4]
    up_refs = refs[4:4 + 2 * (n_layers - 1)]
    base = 4 + 2 * (n_layers - 1)
    h0_ref, c0_ref, fcw_ref, fcb_ref = refs[base:base + 4]
    out_ref, hn_ref, cn_ref = refs[base + 4:base + 7]

    L = n_layers
    T, H = fcw_ref.shape
    B, _, F = x_ref.shape

    # Initial per-layer states, kept as register values for the whole kernel.
    h0_all = h0_ref[...]                                   # (B, L*H)
    c0_all = c0_ref[...]
    h = [h0_all[:, l * H:(l + 1) * H] for l in range(L)]   # each (B, H)
    c = [c0_all[:, l * H:(l + 1) * H] for l in range(L)]

    # Layer-0 input projection hoisted off the recurrence: one GEMM covering
    # all T steps.  The reshape only merges/splits leading dims (layout-free).
    gx0 = (jnp.dot(x_ref[...].reshape(B * T, F), wih0_ref[...],
                   preferred_element_type=jnp.float32)
           .reshape(B, T, 4 * H) + b0_ref[...])            # (B, T, 4H)
    whh0_t = whh0_ref[...]                                  # (H, 4H)

    # Upper layers: W_ih^T and W_hh^T pre-stacked (2H, 4H) so the input
    # projection is fused into the recurrent matmul (one MXU round trip/step).
    wstack = [up_refs[2 * i][...] for i in range(L - 1)]
    bup = [up_refs[2 * i + 1][...] for i in range(L - 1)]

    fcw = fcw_ref[...]                                      # (T, H)
    fc_acc = jnp.zeros((B, H), jnp.float32)
    outs = [[None] * T for _ in range(L)]   # per-step hidden, kept in vregs

    def cell(gates, c_prev):
        # Full-vreg nonlinearities (EUP has its own bundle slot), then
        # lane-slice the gate quarters.  PyTorch gate order: i, f, g, o.
        sg = jax.nn.sigmoid(gates)                          # (B, 4H)
        th = jnp.tanh(gates)                                # (B, 4H)
        i_g = sg[:, 0 * H:1 * H]
        f_g = sg[:, 1 * H:2 * H]
        g_g = th[:, 2 * H:3 * H]
        o_g = sg[:, 3 * H:4 * H]
        c_new = f_g * c_prev + i_g * g_g
        h_new = o_g * jnp.tanh(c_new)
        return h_new, c_new

    # Wavefront schedule: layer l, time t runs at super-step s = t + l, so
    # the critical path is T + L - 1 cell updates instead of T * L and the
    # layer hand-off never touches VMEM scratch.
    for s in range(T + L - 1):
        for l in range(L):
            t = s - l
            if t < 0 or t >= T:
                continue
            if l == 0:
                gates = gx0[:, t, :] + jnp.dot(
                    h[0], whh0_t, preferred_element_type=jnp.float32)
            else:
                inp = jnp.concatenate([outs[l - 1][t], h[l]], axis=-1)  # (B,2H)
                gates = (jnp.dot(inp, wstack[l - 1],
                                 preferred_element_type=jnp.float32)
                         + bup[l - 1])
            h[l], c[l] = cell(gates, c[l])
            if l == L - 1:
                # Folded Linear: elementwise accumulate on the VPU; a single
                # cross-lane reduce happens once, after the loop.
                fc_acc = fc_acc + h[l] * fcw[t:t + 1, :]
            else:
                outs[l][t] = h[l]           # next layer's step-t input (vreg)

    out_ref[...] = jax.nn.sigmoid(
        jnp.sum(fc_acc, axis=-1, keepdims=True) + fcb_ref[...])
    hn_ref[...] = jnp.concatenate(h, axis=-1)               # (B, L*H)
    cn_ref[...] = jnp.concatenate(c, axis=-1)


# ---------------------------------------------------------------------------
# Wrappers
# ---------------------------------------------------------------------------
def init_params(key, n_features, n_periods, n_hidden, n_layers):
    """Deterministic parameter init matching nn.LSTM / nn.Linear shapes.

    All layout work is done here, once:
      * LSTM weights stored pre-transposed (W^T); combined bias b_ih + b_hh.
      * Layers >= 1 store [W_ih^T; W_hh^T] vertically stacked (2H, 4H) so the
        kernel can fuse input + recurrent projections into one matmul.
      * fc weight stored pre-reshaped to (T, H): fc_w[t, j] == W[0, t*H + j],
        matching the out.view(bs, -1) flatten order.
    """
    H = n_hidden
    k = 1.0 / jnp.sqrt(jnp.float32(H))
    keys = jax.random.split(key, 4 * n_layers + 2)

    w_ih0 = jax.random.uniform(keys[0], (4 * H, n_features), jnp.float32, -k, k)
    w_hh0 = jax.random.uniform(keys[1], (4 * H, H), jnp.float32, -k, k)
    b0 = (jax.random.uniform(keys[2], (4 * H,), jnp.float32, -k, k)
          + jax.random.uniform(keys[3], (4 * H,), jnp.float32, -k, k))
    params = {"lstm0": (w_ih0.T, w_hh0.T, b0.reshape(1, 4 * H)), "lstm_up": []}

    for l in range(1, n_layers):
        k0, k1, k2, k3 = keys[4 * l:4 * l + 4]
        w_ih = jax.random.uniform(k0, (4 * H, H), jnp.float32, -k, k)
        w_hh = jax.random.uniform(k1, (4 * H, H), jnp.float32, -k, k)
        b = (jax.random.uniform(k2, (4 * H,), jnp.float32, -k, k)
             + jax.random.uniform(k3, (4 * H,), jnp.float32, -k, k))
        w_stack = jnp.concatenate([w_ih.T, w_hh.T], axis=0)     # (2H, 4H)
        params["lstm_up"].append((w_stack, b.reshape(1, 4 * H)))

    kf = 1.0 / jnp.sqrt(jnp.float32(H * n_periods))
    params["fc_w"] = jax.random.uniform(
        keys[-2], (1, H * n_periods), jnp.float32, -kf, kf).reshape(n_periods, H)
    params["fc_b"] = jax.random.uniform(keys[-1], (1, 1), jnp.float32, -kf, kf)
    return params


def stock_lstm_forward(params, x, hidden, n_layers, n_hidden):
    """Mirrors StockLSTMClassifier.forward.

    x:      (B, T, n_features)            (batch_first)
    hidden: tuple of (B, n_layers, n_hidden)   (as produced by init_hidden)
    returns (out (B, 1), (h (B,L,H), c (B,L,H)))
    """
    B, T, _ = x.shape
    H = n_hidden
    L = n_layers
    h_in, c_in = hidden
    # Free reshapes (minor-dim merge, no permute): the kernel consumes the
    # hidden state directly in (B, L, H) memory order.
    h0 = h_in.reshape(B, L * H)
    c0 = c_in.reshape(B, L * H)

    flat_w = list(params["lstm0"])
    for wb in params["lstm_up"]:
        flat_w.extend(wb)

    vmem = pl.BlockSpec(memory_space=pltpu.MemorySpace.VMEM)
    n_in = 1 + len(flat_w) + 4
    h0_idx = 1 + len(flat_w)

    out, h_n, c_n = pl.pallas_call(
        functools.partial(_fused_forward_kernel, L),
        out_shape=(jax.ShapeDtypeStruct((B, 1), jnp.float32),
                   jax.ShapeDtypeStruct((B, L * H), jnp.float32),
                   jax.ShapeDtypeStruct((B, L * H), jnp.float32)),
        in_specs=[vmem] * n_in,
        out_specs=(vmem, vmem, vmem),
        # h0 -> h_n and c0 -> c_n: same shape/dtype, reuse the buffers.
        input_output_aliases={h0_idx: 1, h0_idx + 1: 2},
    )(x, *flat_w, h0, c0, params["fc_w"], params["fc_b"])

    return out, (h_n.reshape(B, L, H), c_n.reshape(B, L, H))


if __name__ == "__main__":
    # Small shapes implied by the module: batch=2, n_features=4,
    # n_periods(seq)=8, n_hidden=32, n_layers=2.
    B, F, T, H, L = 2, 4, 8, 32, 2

    key = jax.random.PRNGKey(0)
    k_params, k_x = jax.random.split(key)
    params = init_params(k_params, F, T, H, L)

    x = jax.random.normal(k_x, (B, T, F), jnp.float32)
    hidden = (jnp.zeros((B, L, H), jnp.float32),
              jnp.zeros((B, L, H), jnp.float32))   # init_hidden(batch_size)

    fwd = jax.jit(functools.partial(stock_lstm_forward,
                                    n_layers=L, n_hidden=H))
    out, (h_n, c_n) = fwd(params, x, hidden)
    jax.block_until_ready((out, h_n, c_n))

    assert out.shape == (B, 1)
    assert h_n.shape == (B, L, H) and c_n.shape == (B, L, H)
    assert bool(jnp.all((out >= 0.0) & (out <= 1.0)))
    assert bool(jnp.all(jnp.isfinite(h_n))) and bool(jnp.all(jnp.isfinite(c_n)))
    print("KERNEL_OK")
</pallas_src>

<mosaic_0001>
module attributes {stable_mosaic.version = 11 : i64} {
  func.func @_fused_forward_kernel(%arg0: memref<2x8x4xf32, #tpu.memory_space<vmem>>, %arg1: memref<4x128xf32, #tpu.memory_space<vmem>>, %arg2: memref<32x128xf32, #tpu.memory_space<vmem>>, %arg3: memref<1x128xf32, #tpu.memory_space<vmem>>, %arg4: memref<64x128xf32, #tpu.memory_space<vmem>>, %arg5: memref<1x128xf32, #tpu.memory_space<vmem>>, %arg6: memref<2x64xf32, #tpu.memory_space<vmem>>, %arg7: memref<2x64xf32, #tpu.memory_space<vmem>>, %arg8: memref<8x32xf32, #tpu.memory_space<vmem>>, %arg9: memref<1x1xf32, #tpu.memory_space<vmem>>, %arg10: memref<2x1xf32, #tpu.memory_space<vmem>>, %arg11: memref<2x64xf32, #tpu.memory_space<vmem>>, %arg12: memref<2x64xf32, #tpu.memory_space<vmem>>) attributes {dimension_semantics = [], scalar_prefetch = 0 : i64, scratch_operands = 0 : i64, tpu.core_type = #tpu.core_type<tc>} {
    %c0 = arith.constant 0 : index
    %c0_0 = arith.constant 0 : index
    %0 = vector.load %arg6[%c0, %c0_0] : memref<2x64xf32, #tpu.memory_space<vmem>>, vector<2x64xf32>
    %c0_1 = arith.constant 0 : index
    %c0_2 = arith.constant 0 : index
    %1 = vector.load %arg7[%c0_1, %c0_2] : memref<2x64xf32, #tpu.memory_space<vmem>>, vector<2x64xf32>
    %2 = vector.extract_strided_slice %0 {offsets = [0, 0], sizes = [2, 32], strides = [1, 1]} : vector<2x64xf32> to vector<2x32xf32>
    %3 = vector.extract_strided_slice %0 {offsets = [0, 32], sizes = [2, 32], strides = [1, 1]} : vector<2x64xf32> to vector<2x32xf32>
    %4 = vector.extract_strided_slice %1 {offsets = [0, 0], sizes = [2, 32], strides = [1, 1]} : vector<2x64xf32> to vector<2x32xf32>
    %5 = vector.extract_strided_slice %1 {offsets = [0, 32], sizes = [2, 32], strides = [1, 1]} : vector<2x64xf32> to vector<2x32xf32>
    %c0_3 = arith.constant 0 : index
    %c0_4 = arith.constant 0 : index
    %c0_5 = arith.constant 0 : index
    %6 = vector.load %arg0[%c0_3, %c0_4, %c0_5] : memref<2x8x4xf32, #tpu.memory_space<vmem>>, vector<2x8x4xf32>
    %7 = vector.shape_cast %6 : vector<2x8x4xf32> to vector<16x4xf32>
    %c0_6 = arith.constant 0 : index
    %c0_7 = arith.constant 0 : index
    %8 = vector.load %arg1[%c0_6, %c0_7] : memref<4x128xf32, #tpu.memory_space<vmem>>, vector<4x128xf32>
    %cst = arith.constant dense<0.000000e+00> : vector<16x128xf32>
    %9 = tpu.matmul %7, %8, %cst {dimension_numbers = #tpu.dot_dimension_numbers<[1], [0], [0], [1], [0, 0, 1, 1], [], []>} : vector<16x4xf32>, vector<4x128xf32>, vector<16x128xf32> -> vector<16x128xf32>
    %10 = vector.shape_cast %9 : vector<16x128xf32> to vector<2x8x128xf32>
    %c0_8 = arith.constant 0 : index
    %c0_9 = arith.constant 0 : index
    %11 = vector.load %arg3[%c0_8, %c0_9] : memref<1x128xf32, #tpu.memory_space<vmem>>, vector<1x128xf32>
    %12 = vector.shape_cast %11 : vector<1x128xf32> to vector<1x1x128xf32>
    %13 = vector.broadcast %12 : vector<1x1x128xf32> to vector<2x8x128xf32>
    %14 = arith.addf %10, %13 : vector<2x8x128xf32>
    %c0_10 = arith.constant 0 : index
    %c0_11 = arith.constant 0 : index
    %15 = vector.load %arg2[%c0_10, %c0_11] : memref<32x128xf32, #tpu.memory_space<vmem>>, vector<32x128xf32>
    %c0_12 = arith.constant 0 : index
    %c0_13 = arith.constant 0 : index
    %16 = vector.load %arg4[%c0_12, %c0_13] : memref<64x128xf32, #tpu.memory_space<vmem>>, vector<64x128xf32>
    %c0_14 = arith.constant 0 : index
    %c0_15 = arith.constant 0 : index
    %17 = vector.load %arg5[%c0_14, %c0_15] : memref<1x128xf32, #tpu.memory_space<vmem>>, vector<1x128xf32>
    %c0_16 = arith.constant 0 : index
    %c0_17 = arith.constant 0 : index
    %18 = vector.load %arg8[%c0_16, %c0_17] : memref<8x32xf32, #tpu.memory_space<vmem>>, vector<8x32xf32>
    %cst_18 = arith.constant 0.000000e+00 : f32
    %19 = vector.broadcast %cst_18 : f32 to vector<2x32xf32>
    %20 = vector.extract_strided_slice %14 {offsets = [0, 0, 0], sizes = [2, 1, 128], strides = [1, 1, 1]} : vector<2x8x128xf32> to vector<2x1x128xf32>
    %21 = vector.shape_cast %20 : vector<2x1x128xf32> to vector<2x128xf32>
    %cst_19 = arith.constant dense<0.000000e+00> : vector<2x128xf32>
    %22 = tpu.matmul %2, %15, %cst_19 {dimension_numbers = #tpu.dot_dimension_numbers<[1], [0], [0], [1], [0, 0, 1, 1], [], []>} : vector<2x32xf32>, vector<32x128xf32>, vector<2x128xf32> -> vector<2x128xf32>
    %23 = arith.addf %21, %22 : vector<2x128xf32>
    %24 = arith.negf %23 : vector<2x128xf32>
    %25 = math.exp %24 : vector<2x128xf32>
    %cst_20 = arith.constant 1.000000e+00 : f32
    %26 = vector.broadcast %cst_20 : f32 to vector<2x128xf32>
    %27 = arith.addf %26, %25 : vector<2x128xf32>
    %28 = arith.divf %26, %27 : vector<2x128xf32>
    %29 = math.tanh %23 : vector<2x128xf32>
    %30 = vector.extract_strided_slice %28 {offsets = [0, 0], sizes = [2, 32], strides = [1, 1]} : vector<2x128xf32> to vector<2x32xf32>
    %31 = vector.extract_strided_slice %28 {offsets = [0, 32], sizes = [2, 32], strides = [1, 1]} : vector<2x128xf32> to vector<2x32xf32>
    %32 = vector.extract_strided_slice %29 {offsets = [0, 64], sizes = [2, 32], strides = [1, 1]} : vector<2x128xf32> to vector<2x32xf32>
    %33 = vector.extract_strided_slice %28 {offsets = [0, 96], sizes = [2, 32], strides = [1, 1]} : vector<2x128xf32> to vector<2x32xf32>
    %34 = arith.mulf %31, %4 : vector<2x32xf32>
    %35 = arith.mulf %30, %32 : vector<2x32xf32>
    %36 = arith.addf %34, %35 : vector<2x32xf32>
    %37 = math.tanh %36 : vector<2x32xf32>
    %38 = arith.mulf %33, %37 : vector<2x32xf32>
    %39 = vector.extract_strided_slice %14 {offsets = [0, 1, 0], sizes = [2, 1, 128], strides = [1, 1, 1]} : vector<2x8x128xf32> to vector<2x1x128xf32>
    %40 = vector.shape_cast %39 : vector<2x1x128xf32> to vector<2x128xf32>
    %cst_21 = arith.constant dense<0.000000e+00> : vector<2x128xf32>
    %41 = tpu.matmul %38, %15, %cst_21 {dimension_numbers = #tpu.dot_dimension_numbers<[1], [0], [0], [1], [0, 0, 1, 1], [], []>} : vector<2x32xf32>, vector<32x128xf32>, vector<2x128xf32> -> vector<2x128xf32>
    %42 = arith.addf %40, %41 : vector<2x128xf32>
    %43 = arith.negf %42 : vector<2x128xf32>
    %44 = math.exp %43 : vector<2x128xf32>
    %cst_22 = arith.constant 1.000000e+00 : f32
    %45 = vector.broadcast %cst_22 : f32 to vector<2x128xf32>
    %46 = arith.addf %45, %44 : vector<2x128xf32>
    %47 = arith.divf %45, %46 : vector<2x128xf32>
    %48 = math.tanh %42 : vector<2x128xf32>
    %49 = vector.extract_strided_slice %47 {offsets = [0, 0], sizes = [2, 32], strides = [1, 1]} : vector<2x128xf32> to vector<2x32xf32>
    %50 = vector.extract_strided_slice %47 {offsets = [0, 32], sizes = [2, 32], strides = [1, 1]} : vector<2x128xf32> to vector<2x32xf32>
    %51 = vector.extract_strided_slice %48 {offsets = [0, 64], sizes = [2, 32], strides = [1, 1]} : vector<2x128xf32> to vector<2x32xf32>
    %52 = vector.extract_strided_slice %47 {offsets = [0, 96], sizes = [2, 32], strides = [1, 1]} : vector<2x128xf32> to vector<2x32xf32>
    %53 = arith.mulf %50, %36 : vector<2x32xf32>
    %54 = arith.mulf %49, %51 : vector<2x32xf32>
    %55 = arith.addf %53, %54 : vector<2x32xf32>
    %56 = math.tanh %55 : vector<2x32xf32>
    %57 = arith.mulf %52, %56 : vector<2x32xf32>
    %58 = tpu.concatenate %38, %3 in 1 : vector<2x32xf32>, vector<2x32xf32> -> vector<2x64xf32>
    %cst_23 = arith.constant dense<0.000000e+00> : vector<2x128xf32>
    %59 = tpu.matmul %58, %16, %cst_23 {dimension_numbers = #tpu.dot_dimension_numbers<[1], [0], [0], [1], [0, 0, 1, 1], [], []>} : vector<2x64xf32>, vector<64x128xf32>, vector<2x128xf32> -> vector<2x128xf32>
    %60 = vector.broadcast %17 : vector<1x128xf32> to vector<2x128xf32>
    %61 = arith.addf %59, %60 : vector<2x128xf32>
    %62 = arith.negf %61 : vector<2x128xf32>
    %63 = math.exp %62 : vector<2x128xf32>
    %cst_24 = arith.constant 1.000000e+00 : f32
    %64 = vector.broadcast %cst_24 : f32 to vector<2x128xf32>
    %65 = arith.addf %64, %63 : vector<2x128xf32>
    %66 = arith.divf %64, %65 : vector<2x128xf32>
    %67 = math.tanh %61 : vector<2x128xf32>
    %68 = vector.extract_strided_slice %66 {offsets = [0, 0], sizes = [2, 32], strides = [1, 1]} : vector<2x128xf32> to vector<2x32xf32>
    %69 = vector.extract_strided_slice %66 {offsets = [0, 32], sizes = [2, 32], strides = [1, 1]} : vector<2x128xf32> to vector<2x32xf32>
    %70 = vector.extract_strided_slice %67 {offsets = [0, 64], sizes = [2, 32], strides = [1, 1]} : vector<2x128xf32> to vector<2x32xf32>
    %71 = vector.extract_strided_slice %66 {offsets = [0, 96], sizes = [2, 32], strides = [1, 1]} : vector<2x128xf32> to vector<2x32xf32>
    %72 = arith.mulf %69, %5 : vector<2x32xf32>
    %73 = arith.mulf %68, %70 : vector<2x32xf32>
    %74 = arith.addf %72, %73 : vector<2x32xf32>
    %75 = math.tanh %74 : vector<2x32xf32>
    %76 = arith.mulf %71, %75 : vector<2x32xf32>
    %77 = vector.extract_strided_slice %18 {offsets = [0, 0], sizes = [1, 32], strides = [1, 1]} : vector<8x32xf32> to vector<1x32xf32>
    %78 = vector.broadcast %77 : vector<1x32xf32> to vector<2x32xf32>
    %79 = arith.mulf %76, %78 : vector<2x32xf32>
    %80 = arith.addf %19, %79 : vector<2x32xf32>
    %81 = vector.extract_strided_slice %14 {offsets = [0, 2, 0], sizes = [2, 1, 128], strides = [1, 1, 1]} : vector<2x8x128xf32> to vector<2x1x128xf32>
    %82 = vector.shape_cast %81 : vector<2x1x128xf32> to vector<2x128xf32>
    %cst_25 = arith.constant dense<0.000000e+00> : vector<2x128xf32>
    %83 = tpu.matmul %57, %15, %cst_25 {dimension_numbers = #tpu.dot_dimension_numbers<[1], [0], [0], [1], [0, 0, 1, 1], [], []>} : vector<2x32xf32>, vector<32x128xf32>, vector<2x128xf32> -> vector<2x128xf32>
    %84 = arith.addf %82, %83 : vector<2x128xf32>
    %85 = arith.negf %84 : vector<2x128xf32>
    %86 = math.exp %85 : vector<2x128xf32>
    %cst_26 = arith.constant 1.000000e+00 : f32
    %87 = vector.broadcast %cst_26 : f32 to vector<2x128xf32>
    %88 = arith.addf %87, %86 : vector<2x128xf32>
    %89 = arith.divf %87, %88 : vector<2x128xf32>
    %90 = math.tanh %84 : vector<2x128xf32>
    %91 = vector.extract_strided_slice %89 {offsets = [0, 0], sizes = [2, 32], strides = [1, 1]} : vector<2x128xf32> to vector<2x32xf32>
    %92 = vector.extract_strided_slice %89 {offsets = [0, 32], sizes = [2, 32], strides = [1, 1]} : vector<2x128xf32> to vector<2x32xf32>
    %93 = vector.extract_strided_slice %90 {offsets = [0, 64], sizes = [2, 32], strides = [1, 1]} : vector<2x128xf32> to vector<2x32xf32>
    %94 = vector.extract_strided_slice %89 {offsets = [0, 96], sizes = [2, 32], strides = [1, 1]} : vector<2x128xf32> to vector<2x32xf32>
    %95 = arith.mulf %92, %55 : vector<2x32xf32>
    %96 = arith.mulf %91, %93 : vector<2x32xf32>
    %97 = arith.addf %95, %96 : vector<2x32xf32>
    %98 = math.tanh %97 : vector<2x32xf32>
    %99 = arith.mulf %94, %98 : vector<2x32xf32>
    %100 = tpu.concatenate %57, %76 in 1 : vector<2x32xf32>, vector<2x32xf32> -> vector<2x64xf32>
    %cst_27 = arith.constant dense<0.000000e+00> : vector<2x128xf32>
    %101 = tpu.matmul %100, %16, %cst_27 {dimension_numbers = #tpu.dot_dimension_numbers<[1], [0], [0], [1], [0, 0, 1, 1], [], []>} : vector<2x64xf32>, vector<64x128xf32>, vector<2x128xf32> -> vector<2x128xf32>
    %102 = vector.broadcast %17 : vector<1x128xf32> to vector<2x128xf32>
    %103 = arith.addf %101, %102 : vector<2x128xf32>
    %104 = arith.negf %103 : vector<2x128xf32>
    %105 = math.exp %104 : vector<2x128xf32>
    %cst_28 = arith.constant 1.000000e+00 : f32
    %106 = vector.broadcast %cst_28 : f32 to vector<2x128xf32>
    %107 = arith.addf %106, %105 : vector<2x128xf32>
    %108 = arith.divf %106, %107 : vector<2x128xf32>
    %109 = math.tanh %103 : vector<2x128xf32>
    %110 = vector.extract_strided_slice %108 {offsets = [0, 0], sizes = [2, 32], strides = [1, 1]} : vector<2x128xf32> to vector<2x32xf32>
    %111 = vector.extract_strided_slice %108 {offsets = [0, 32], sizes = [2, 32], strides = [1, 1]} : vector<2x128xf32> to vector<2x32xf32>
    %112 = vector.extract_strided_slice %109 {offsets = [0, 64], sizes = [2, 32], strides = [1, 1]} : vector<2x128xf32> to vector<2x32xf32>
    %113 = vector.extract_strided_slice %108 {offsets = [0, 96], sizes = [2, 32], strides = [1, 1]} : vector<2x128xf32> to vector<2x32xf32>
    %114 = arith.mulf %111, %74 : vector<2x32xf32>
    %115 = arith.mulf %110, %112 : vector<2x32xf32>
    %116 = arith.addf %114, %115 : vector<2x32xf32>
    %117 = math.tanh %116 : vector<2x32xf32>
    %118 = arith.mulf %113, %117 : vector<2x32xf32>
    %119 = vector.extract_strided_slice %18 {offsets = [1, 0], sizes = [1, 32], strides = [1, 1]} : vector<8x32xf32> to vector<1x32xf32>
    %120 = vector.broadcast %119 : vector<1x32xf32> to vector<2x32xf32>
    %121 = arith.mulf %118, %120 : vector<2x32xf32>
    %122 = arith.addf %80, %121 : vector<2x32xf32>
    %123 = vector.extract_strided_slice %14 {offsets = [0, 3, 0], sizes = [2, 1, 128], strides = [1, 1, 1]} : vector<2x8x128xf32> to vector<2x1x128xf32>
    %124 = vector.shape_cast %123 : vector<2x1x128xf32> to vector<2x128xf32>
    %cst_29 = arith.constant dense<0.000000e+00> : vector<2x128xf32>
    %125 = tpu.matmul %99, %15, %cst_29 {dimension_numbers = #tpu.dot_dimension_numbers<[1], [0], [0], [1], [0, 0, 1, 1], [], []>} : vector<2x32xf32>, vector<32x128xf32>, vector<2x128xf32> -> vector<2x128xf32>
    %126 = arith.addf %124, %125 : vector<2x128xf32>
    %127 = arith.negf %126 : vector<2x128xf32>
    %128 = math.exp %127 : vector<2x128xf32>
    %cst_30 = arith.constant 1.000000e+00 : f32
    %129 = vector.broadcast %cst_30 : f32 to vector<2x128xf32>
    %130 = arith.addf %129, %128 : vector<2x128xf32>
    %131 = arith.divf %129, %130 : vector<2x128xf32>
    %132 = math.tanh %126 : vector<2x128xf32>
    %133 = vector.extract_strided_slice %131 {offsets = [0, 0], sizes = [2, 32], strides = [1, 1]} : vector<2x128xf32> to vector<2x32xf32>
    %134 = vector.extract_strided_slice %131 {offsets = [0, 32], sizes = [2, 32], strides = [1, 1]} : vector<2x128xf32> to vector<2x32xf32>
    %135 = vector.extract_strided_slice %132 {offsets = [0, 64], sizes = [2, 32], strides = [1, 1]} : vector<2x128xf32> to vector<2x32xf32>
    %136 = vector.extract_strided_slice %131 {offsets = [0, 96], sizes = [2, 32], strides = [1, 1]} : vector<2x128xf32> to vector<2x32xf32>
    %137 = arith.mulf %134, %97 : vector<2x32xf32>
    %138 = arith.mulf %133, %135 : vector<2x32xf32>
    %139 = arith.addf %137, %138 : vector<2x32xf32>
    %140 = math.tanh %139 : vector<2x32xf32>
    %141 = arith.mulf %136, %140 : vector<2x32xf32>
    %142 = tpu.concatenate %99, %118 in 1 : vector<2x32xf32>, vector<2x32xf32> -> vector<2x64xf32>
    %cst_31 = arith.constant dense<0.000000e+00> : vector<2x128xf32>
    %143 = tpu.matmul %142, %16, %cst_31 {dimension_numbers = #tpu.dot_dimension_numbers<[1], [0], [0], [1], [0, 0, 1, 1], [], []>} : vector<2x64xf32>, vector<64x128xf32>, vector<2x128xf32> -> vector<2x128xf32>
    %144 = vector.broadcast %17 : vector<1x128xf32> to vector<2x128xf32>
    %145 = arith.addf %143, %144 : vector<2x128xf32>
    %146 = arith.negf %145 : vector<2x128xf32>
    %147 = math.exp %146 : vector<2x128xf32>
    %cst_32 = arith.constant 1.000000e+00 : f32
    %148 = vector.broadcast %cst_32 : f32 to vector<2x128xf32>
    %149 = arith.addf %148, %147 : vector<2x128xf32>
    %150 = arith.divf %148, %149 : vector<2x128xf32>
    %151 = math.tanh %145 : vector<2x128xf32>
    %152 = vector.extract_strided_slice %150 {offsets = [0, 0], sizes = [2, 32], strides = [1, 1]} : vector<2x128xf32> to vector<2x32xf32>
    %153 = vector.extract_strided_slice %150 {offsets = [0, 32], sizes = [2, 32], strides = [1, 1]} : vector<2x128xf32> to vector<2x32xf32>
    %154 = vector.extract_strided_slice %151 {offsets = [0, 64], sizes = [2, 32], strides = [1, 1]} : vector<2x128xf32> to vector<2x32xf32>
    %155 = vector.extract_strided_slice %150 {offsets = [0, 96], sizes = [2, 32], strides = [1, 1]} : vector<2x128xf32> to vector<2x32xf32>
    %156 = arith.mulf %153, %116 : vector<2x32xf32>
    %157 = arith.mulf %152, %154 : vector<2x32xf32>
    %158 = arith.addf %156, %157 : vector<2x32xf32>
    %159 = math.tanh %158 : vector<2x32xf32>
    %160 = arith.mulf %155, %159 : vector<2x32xf32>
    %161 = vector.extract_strided_slice %18 {offsets = [2, 0], sizes = [1, 32], strides = [1, 1]} : vector<8x32xf32> to vector<1x32xf32>
    %162 = vector.broadcast %161 : vector<1x32xf32> to vector<2x32xf32>
    %163 = arith.mulf %160, %162 : vector<2x32xf32>
    %164 = arith.addf %122, %163 : vector<2x32xf32>
    %165 = vector.extract_strided_slice %14 {offsets = [0, 4, 0], sizes = [2, 1, 128], strides = [1, 1, 1]} : vector<2x8x128xf32> to vector<2x1x128xf32>
    %166 = vector.shape_cast %165 : vector<2x1x128xf32> to vector<2x128xf32>
    %cst_33 = arith.constant dense<0.000000e+00> : vector<2x128xf32>
    %167 = tpu.matmul %141, %15, %cst_33 {dimension_numbers = #tpu.dot_dimension_numbers<[1], [0], [0], [1], [0, 0, 1, 1], [], []>} : vector<2x32xf32>, vector<32x128xf32>, vector<2x128xf32> -> vector<2x128xf32>
    %168 = arith.addf %166, %167 : vector<2x128xf32>
    %169 = arith.negf %168 : vector<2x128xf32>
    %170 = math.exp %169 : vector<2x128xf32>
    %cst_34 = arith.constant 1.000000e+00 : f32
    %171 = vector.broadcast %cst_34 : f32 to vector<2x128xf32>
    %172 = arith.addf %171, %170 : vector<2x128xf32>
    %173 = arith.divf %171, %172 : vector<2x128xf32>
    %174 = math.tanh %168 : vector<2x128xf32>
    %175 = vector.extract_strided_slice %173 {offsets = [0, 0], sizes = [2, 32], strides = [1, 1]} : vector<2x128xf32> to vector<2x32xf32>
    %176 = vector.extract_strided_slice %173 {offsets = [0, 32], sizes = [2, 32], strides = [1, 1]} : vector<2x128xf32> to vector<2x32xf32>
    %177 = vector.extract_strided_slice %174 {offsets = [0, 64], sizes = [2, 32], strides = [1, 1]} : vector<2x128xf32> to vector<2x32xf32>
    %178 = vector.extract_strided_slice %173 {offsets = [0, 96], sizes = [2, 32], strides = [1, 1]} : vector<2x128xf32> to vector<2x32xf32>
    %179 = arith.mulf %176, %139 : vector<2x32xf32>
    %180 = arith.mulf %175, %177 : vector<2x32xf32>
    %181 = arith.addf %179, %180 : vector<2x32xf32>
    %182 = math.tanh %181 : vector<2x32xf32>
    %183 = arith.mulf %178, %182 : vector<2x32xf32>
    %184 = tpu.concatenate %141, %160 in 1 : vector<2x32xf32>, vector<2x32xf32> -> vector<2x64xf32>
    %cst_35 = arith.constant dense<0.000000e+00> : vector<2x128xf32>
    %185 = tpu.matmul %184, %16, %cst_35 {dimension_numbers = #tpu.dot_dimension_numbers<[1], [0], [0], [1], [0, 0, 1, 1], [], []>} : vector<2x64xf32>, vector<64x128xf32>, vector<2x128xf32> -> vector<2x128xf32>
    %186 = vector.broadcast %17 : vector<1x128xf32> to vector<2x128xf32>
    %187 = arith.addf %185, %186 : vector<2x128xf32>
    %188 = arith.negf %187 : vector<2x128xf32>
    %189 = math.exp %188 : vector<2x128xf32>
    %cst_36 = arith.constant 1.000000e+00 : f32
    %190 = vector.broadcast %cst_36 : f32 to vector<2x128xf32>
    %191 = arith.addf %190, %189 : vector<2x128xf32>
    %192 = arith.divf %190, %191 : vector<2x128xf32>
    %193 = math.tanh %187 : vector<2x128xf32>
    %194 = vector.extract_strided_slice %192 {offsets = [0, 0], sizes = [2, 32], strides = [1, 1]} : vector<2x128xf32> to vector<2x32xf32>
    %195 = vector.extract_strided_slice %192 {offsets = [0, 32], sizes = [2, 32], strides = [1, 1]} : vector<2x128xf32> to vector<2x32xf32>
    %196 = vector.extract_strided_slice %193 {offsets = [0, 64], sizes = [2, 32], strides = [1, 1]} : vector<2x128xf32> to vector<2x32xf32>
    %197 = vector.extract_strided_slice %192 {offsets = [0, 96], sizes = [2, 32], strides = [1, 1]} : vector<2x128xf32> to vector<2x32xf32>
    %198 = arith.mulf %195, %158 : vector<2x32xf32>
    %199 = arith.mulf %194, %196 : vector<2x32xf32>
    %200 = arith.addf %198, %199 : vector<2x32xf32>
    %201 = math.tanh %200 : vector<2x32xf32>
    %202 = arith.mulf %197, %201 : vector<2x32xf32>
    %203 = vector.extract_strided_slice %18 {offsets = [3, 0], sizes = [1, 32], strides = [1, 1]} : vector<8x32xf32> to vector<1x32xf32>
    %204 = vector.broadcast %203 : vector<1x32xf32> to vector<2x32xf32>
    %205 = arith.mulf %202, %204 : vector<2x32xf32>
    %206 = arith.addf %164, %205 : vector<2x32xf32>
    %207 = vector.extract_strided_slice %14 {offsets = [0, 5, 0], sizes = [2, 1, 128], strides = [1, 1, 1]} : vector<2x8x128xf32> to vector<2x1x128xf32>
    %208 = vector.shape_cast %207 : vector<2x1x128xf32> to vector<2x128xf32>
    %cst_37 = arith.constant dense<0.000000e+00> : vector<2x128xf32>
    %209 = tpu.matmul %183, %15, %cst_37 {dimension_numbers = #tpu.dot_dimension_numbers<[1], [0], [0], [1], [0, 0, 1, 1], [], []>} : vector<2x32xf32>, vector<32x128xf32>, vector<2x128xf32> -> vector<2x128xf32>
    %210 = arith.addf %208, %209 : vector<2x128xf32>
    %211 = arith.negf %210 : vector<2x128xf32>
    %212 = math.exp %211 : vector<2x128xf32>
    %cst_38 = arith.constant 1.000000e+00 : f32
    %213 = vector.broadcast %cst_38 : f32 to vector<2x128xf32>
    %214 = arith.addf %213, %212 : vector<2x128xf32>
    %215 = arith.divf %213, %214 : vector<2x128xf32>
    %216 = math.tanh %210 : vector<2x128xf32>
    %217 = vector.extract_strided_slice %215 {offsets = [0, 0], sizes = [2, 32], strides = [1, 1]} : vector<2x128xf32> to vector<2x32xf32>
    %218 = vector.extract_strided_slice %215 {offsets = [0, 32], sizes = [2, 32], strides = [1, 1]} : vector<2x128xf32> to vector<2x32xf32>
    %219 = vector.extract_strided_slice %216 {offsets = [0, 64], sizes = [2, 32], strides = [1, 1]} : vector<2x128xf32> to vector<2x32xf32>
    %220 = vector.extract_strided_slice %215 {offsets = [0, 96], sizes = [2, 32], strides = [1, 1]} : vector<2x128xf32> to vector<2x32xf32>
    %221 = arith.mulf %218, %181 : vector<2x32xf32>
    %222 = arith.mulf %217, %219 : vector<2x32xf32>
    %223 = arith.addf %221, %222 : vector<2x32xf32>
    %224 = math.tanh %223 : vector<2x32xf32>
    %225 = arith.mulf %220, %224 : vector<2x32xf32>
    %226 = tpu.concatenate %183, %202 in 1 : vector<2x32xf32>, vector<2x32xf32> -> vector<2x64xf32>
    %cst_39 = arith.constant dense<0.000000e+00> : vector<2x128xf32>
    %227 = tpu.matmul %226, %16, %cst_39 {dimension_numbers = #tpu.dot_dimension_numbers<[1], [0], [0], [1], [0, 0, 1, 1], [], []>} : vector<2x64xf32>, vector<64x128xf32>, vector<2x128xf32> -> vector<2x128xf32>
    %228 = vector.broadcast %17 : vector<1x128xf32> to vector<2x128xf32>
    %229 = arith.addf %227, %228 : vector<2x128xf32>
    %230 = arith.negf %229 : vector<2x128xf32>
    %231 = math.exp %230 : vector<2x128xf32>
    %cst_40 = arith.constant 1.000000e+00 : f32
    %232 = vector.broadcast %cst_40 : f32 to vector<2x128xf32>
    %233 = arith.addf %232, %231 : vector<2x128xf32>
    %234 = arith.divf %232, %233 : vector<2x128xf32>
    %235 = math.tanh %229 : vector<2x128xf32>
    %236 = vector.extract_strided_slice %234 {offsets = [0, 0], sizes = [2, 32], strides = [1, 1]} : vector<2x128xf32> to vector<2x32xf32>
    %237 = vector.extract_strided_slice %234 {offsets = [0, 32], sizes = [2, 32], strides = [1, 1]} : vector<2x128xf32> to vector<2x32xf32>
    %238 = vector.extract_strided_slice %235 {offsets = [0, 64], sizes = [2, 32], strides = [1, 1]} : vector<2x128xf32> to vector<2x32xf32>
    %239 = vector.extract_strided_slice %234 {offsets = [0, 96], sizes = [2, 32], strides = [1, 1]} : vector<2x128xf32> to vector<2x32xf32>
    %240 = arith.mulf %237, %200 : vector<2x32xf32>
    %241 = arith.mulf %236, %238 : vector<2x32xf32>
    %242 = arith.addf %240, %241 : vector<2x32xf32>
    %243 = math.tanh %242 : vector<2x32xf32>
    %244 = arith.mulf %239, %243 : vector<2x32xf32>
    %245 = vector.extract_strided_slice %18 {offsets = [4, 0], sizes = [1, 32], strides = [1, 1]} : vector<8x32xf32> to vector<1x32xf32>
    %246 = vector.broadcast %245 : vector<1x32xf32> to vector<2x32xf32>
    %247 = arith.mulf %244, %246 : vector<2x32xf32>
    %248 = arith.addf %206, %247 : vector<2x32xf32>
    %249 = vector.extract_strided_slice %14 {offsets = [0, 6, 0], sizes = [2, 1, 128], strides = [1, 1, 1]} : vector<2x8x128xf32> to vector<2x1x128xf32>
    %250 = vector.shape_cast %249 : vector<2x1x128xf32> to vector<2x128xf32>
    %cst_41 = arith.constant dense<0.000000e+00> : vector<2x128xf32>
    %251 = tpu.matmul %225, %15, %cst_41 {dimension_numbers = #tpu.dot_dimension_numbers<[1], [0], [0], [1], [0, 0, 1, 1], [], []>} : vector<2x32xf32>, vector<32x128xf32>, vector<2x128xf32> -> vector<2x128xf32>
    %252 = arith.addf %250, %251 : vector<2x128xf32>
    %253 = arith.negf %252 : vector<2x128xf32>
    %254 = math.exp %253 : vector<2x128xf32>
    %cst_42 = arith.constant 1.000000e+00 : f32
    %255 = vector.broadcast %cst_42 : f32 to vector<2x128xf32>
    %256 = arith.addf %255, %254 : vector<2x128xf32>
    %257 = arith.divf %255, %256 : vector<2x128xf32>
    %258 = math.tanh %252 : vector<2x128xf32>
    %259 = vector.extract_strided_slice %257 {offsets = [0, 0], sizes = [2, 32], strides = [1, 1]} : vector<2x128xf32> to vector<2x32xf32>
    %260 = vector.extract_strided_slice %257 {offsets = [0, 32], sizes = [2, 32], strides = [1, 1]} : vector<2x128xf32> to vector<2x32xf32>
    %261 = vector.extract_strided_slice %258 {offsets = [0, 64], sizes = [2, 32], strides = [1, 1]} : vector<2x128xf32> to vector<2x32xf32>
    %262 = vector.extract_strided_slice %257 {offsets = [0, 96], sizes = [2, 32], strides = [1, 1]} : vector<2x128xf32> to vector<2x32xf32>
    %263 = arith.mulf %260, %223 : vector<2x32xf32>
    %264 = arith.mulf %259, %261 : vector<2x32xf32>
    %265 = arith.addf %263, %264 : vector<2x32xf32>
    %266 = math.tanh %265 : vector<2x32xf32>
    %267 = arith.mulf %262, %266 : vector<2x32xf32>
    %268 = tpu.concatenate %225, %244 in 1 : vector<2x32xf32>, vector<2x32xf32> -> vector<2x64xf32>
    %cst_43 = arith.constant dense<0.000000e+00> : vector<2x128xf32>
    %269 = tpu.matmul %268, %16, %cst_43 {dimension_numbers = #tpu.dot_dimension_numbers<[1], [0], [0], [1], [0, 0, 1, 1], [], []>} : vector<2x64xf32>, vector<64x128xf32>, vector<2x128xf32> -> vector<2x128xf32>
    %270 = vector.broadcast %17 : vector<1x128xf32> to vector<2x128xf32>
    %271 = arith.addf %269, %270 : vector<2x128xf32>
    %272 = arith.negf %271 : vector<2x128xf32>
    %273 = math.exp %272 : vector<2x128xf32>
    %cst_44 = arith.constant 1.000000e+00 : f32
    %274 = vector.broadcast %cst_44 : f32 to vector<2x128xf32>
    %275 = arith.addf %274, %273 : vector<2x128xf32>
    %276 = arith.divf %274, %275 : vector<2x128xf32>
    %277 = math.tanh %271 : vector<2x128xf32>
    %278 = vector.extract_strided_slice %276 {offsets = [0, 0], sizes = [2, 32], strides = [1, 1]} : vector<2x128xf32> to vector<2x32xf32>
    %279 = vector.extract_strided_slice %276 {offsets = [0, 32], sizes = [2, 32], strides = [1, 1]} : vector<2x128xf32> to vector<2x32xf32>
    %280 = vector.extract_strided_slice %277 {offsets = [0, 64], sizes = [2, 32], strides = [1, 1]} : vector<2x128xf32> to vector<2x32xf32>
    %281 = vector.extract_strided_slice %276 {offsets = [0, 96], sizes = [2, 32], strides = [1, 1]} : vector<2x128xf32> to vector<2x32xf32>
    %282 = arith.mulf %279, %242 : vector<2x32xf32>
    %283 = arith.mulf %278, %280 : vector<2x32xf32>
    %284 = arith.addf %282, %283 : vector<2x32xf32>
    %285 = math.tanh %284 : vector<2x32xf32>
    %286 = arith.mulf %281, %285 : vector<2x32xf32>
    %287 = vector.extract_strided_slice %18 {offsets = [5, 0], sizes = [1, 32], strides = [1, 1]} : vector<8x32xf32> to vector<1x32xf32>
    %288 = vector.broadcast %287 : vector<1x32xf32> to vector<2x32xf32>
    %289 = arith.mulf %286, %288 : vector<2x32xf32>
    %290 = arith.addf %248, %289 : vector<2x32xf32>
    %291 = vector.extract_strided_slice %14 {offsets = [0, 7, 0], sizes = [2, 1, 128], strides = [1, 1, 1]} : vector<2x8x128xf32> to vector<2x1x128xf32>
    %292 = vector.shape_cast %291 : vector<2x1x128xf32> to vector<2x128xf32>
    %cst_45 = arith.constant dense<0.000000e+00> : vector<2x128xf32>
    %293 = tpu.matmul %267, %15, %cst_45 {dimension_numbers = #tpu.dot_dimension_numbers<[1], [0], [0], [1], [0, 0, 1, 1], [], []>} : vector<2x32xf32>, vector<32x128xf32>, vector<2x128xf32> -> vector<2x128xf32>
    %294 = arith.addf %292, %293 : vector<2x128xf32>
    %295 = arith.negf %294 : vector<2x128xf32>
    %296 = math.exp %295 : vector<2x128xf32>
    %cst_46 = arith.constant 1.000000e+00 : f32
    %297 = vector.broadcast %cst_46 : f32 to vector<2x128xf32>
    %298 = arith.addf %297, %296 : vector<2x128xf32>
    %299 = arith.divf %297, %298 : vector<2x128xf32>
    %300 = math.tanh %294 : vector<2x128xf32>
    %301 = vector.extract_strided_slice %299 {offsets = [0, 0], sizes = [2, 32], strides = [1, 1]} : vector<2x128xf32> to vector<2x32xf32>
    %302 = vector.extract_strided_slice %299 {offsets = [0, 32], sizes = [2, 32], strides = [1, 1]} : vector<2x128xf32> to vector<2x32xf32>
    %303 = vector.extract_strided_slice %300 {offsets = [0, 64], sizes = [2, 32], strides = [1, 1]} : vector<2x128xf32> to vector<2x32xf32>
    %304 = vector.extract_strided_slice %299 {offsets = [0, 96], sizes = [2, 32], strides = [1, 1]} : vector<2x128xf32> to vector<2x32xf32>
    %305 = arith.mulf %302, %265 : vector<2x32xf32>
    %306 = arith.mulf %301, %303 : vector<2x32xf32>
    %307 = arith.addf %305, %306 : vector<2x32xf32>
    %308 = math.tanh %307 : vector<2x32xf32>
    %309 = arith.mulf %304, %308 : vector<2x32xf32>
    %310 = tpu.concatenate %267, %286 in 1 : vector<2x32xf32>, vector<2x32xf32> -> vector<2x64xf32>
    %cst_47 = arith.constant dense<0.000000e+00> : vector<2x128xf32>
    %311 = tpu.matmul %310, %16, %cst_47 {dimension_numbers = #tpu.dot_dimension_numbers<[1], [0], [0], [1], [0, 0, 1, 1], [], []>} : vector<2x64xf32>, vector<64x128xf32>, vector<2x128xf32> -> vector<2x128xf32>
    %312 = vector.broadcast %17 : vector<1x128xf32> to vector<2x128xf32>
    %313 = arith.addf %311, %312 : vector<2x128xf32>
    %314 = arith.negf %313 : vector<2x128xf32>
    %315 = math.exp %314 : vector<2x128xf32>
    %cst_48 = arith.constant 1.000000e+00 : f32
    %316 = vector.broadcast %cst_48 : f32 to vector<2x128xf32>
    %317 = arith.addf %316, %315 : vector<2x128xf32>
    %318 = arith.divf %316, %317 : vector<2x128xf32>
    %319 = math.tanh %313 : vector<2x128xf32>
    %320 = vector.extract_strided_slice %318 {offsets = [0, 0], sizes = [2, 32], strides = [1, 1]} : vector<2x128xf32> to vector<2x32xf32>
    %321 = vector.extract_strided_slice %318 {offsets = [0, 32], sizes = [2, 32], strides = [1, 1]} : vector<2x128xf32> to vector<2x32xf32>
    %322 = vector.extract_strided_slice %319 {offsets = [0, 64], sizes = [2, 32], strides = [1, 1]} : vector<2x128xf32> to vector<2x32xf32>
    %323 = vector.extract_strided_slice %318 {offsets = [0, 96], sizes = [2, 32], strides = [1, 1]} : vector<2x128xf32> to vector<2x32xf32>
    %324 = arith.mulf %321, %284 : vector<2x32xf32>
    %325 = arith.mulf %320, %322 : vector<2x32xf32>
    %326 = arith.addf %324, %325 : vector<2x32xf32>
    %327 = math.tanh %326 : vector<2x32xf32>
    %328 = arith.mulf %323, %327 : vector<2x32xf32>
    %329 = vector.extract_strided_slice %18 {offsets = [6, 0], sizes = [1, 32], strides = [1, 1]} : vector<8x32xf32> to vector<1x32xf32>
    %330 = vector.broadcast %329 : vector<1x32xf32> to vector<2x32xf32>
    %331 = arith.mulf %328, %330 : vector<2x32xf32>
    %332 = arith.addf %290, %331 : vector<2x32xf32>
    %333 = tpu.concatenate %309, %328 in 1 : vector<2x32xf32>, vector<2x32xf32> -> vector<2x64xf32>
    %cst_49 = arith.constant dense<0.000000e+00> : vector<2x128xf32>
    %334 = tpu.matmul %333, %16, %cst_49 {dimension_numbers = #tpu.dot_dimension_numbers<[1], [0], [0], [1], [0, 0, 1, 1], [], []>} : vector<2x64xf32>, vector<64x128xf32>, vector<2x128xf32> -> vector<2x128xf32>
    %335 = vector.broadcast %17 : vector<1x128xf32> to vector<2x128xf32>
    %336 = arith.addf %334, %335 : vector<2x128xf32>
    %337 = arith.negf %336 : vector<2x128xf32>
    %338 = math.exp %337 : vector<2x128xf32>
    %cst_50 = arith.constant 1.000000e+00 : f32
    %339 = vector.broadcast %cst_50 : f32 to vector<2x128xf32>
    %340 = arith.addf %339, %338 : vector<2x128xf32>
    %341 = arith.divf %339, %340 : vector<2x128xf32>
    %342 = math.tanh %336 : vector<2x128xf32>
    %343 = vector.extract_strided_slice %341 {offsets = [0, 0], sizes = [2, 32], strides = [1, 1]} : vector<2x128xf32> to vector<2x32xf32>
    %344 = vector.extract_strided_slice %341 {offsets = [0, 32], sizes = [2, 32], strides = [1, 1]} : vector<2x128xf32> to vector<2x32xf32>
    %345 = vector.extract_strided_slice %342 {offsets = [0, 64], sizes = [2, 32], strides = [1, 1]} : vector<2x128xf32> to vector<2x32xf32>
    %346 = vector.extract_strided_slice %341 {offsets = [0, 96], sizes = [2, 32], strides = [1, 1]} : vector<2x128xf32> to vector<2x32xf32>
    %347 = arith.mulf %344, %326 : vector<2x32xf32>
    %348 = arith.mulf %343, %345 : vector<2x32xf32>
    %349 = arith.addf %347, %348 : vector<2x32xf32>
    %350 = math.tanh %349 : vector<2x32xf32>
    %351 = arith.mulf %346, %350 : vector<2x32xf32>
    %352 = vector.extract_strided_slice %18 {offsets = [7, 0], sizes = [1, 32], strides = [1, 1]} : vector<8x32xf32> to vector<1x32xf32>
    %353 = vector.broadcast %352 : vector<1x32xf32> to vector<2x32xf32>
    %354 = arith.mulf %351, %353 : vector<2x32xf32>
    %355 = arith.addf %332, %354 : vector<2x32xf32>
    %cst_51 = arith.constant dense<0.000000e+00> : vector<2xf32>
    %356 = vector.multi_reduction <add>, %355, %cst_51 [1] : vector<2x32xf32> to vector<2xf32>
    %357 = vector.shape_cast %356 : vector<2xf32> to vector<2x1xf32>
    %c0_52 = arith.constant 0 : index
    %c0_53 = arith.constant 0 : index
    %358 = vector.load %arg9[%c0_52, %c0_53] : memref<1x1xf32, #tpu.memory_space<vmem>>, vector<1x1xf32>
    %359 = vector.broadcast %358 : vector<1x1xf32> to vector<2x1xf32>
    %360 = arith.addf %357, %359 : vector<2x1xf32>
    %361 = arith.negf %360 : vector<2x1xf32>
    %362 = math.exp %361 : vector<2x1xf32>
    %cst_54 = arith.constant 1.000000e+00 : f32
    %363 = vector.broadcast %cst_54 : f32 to vector<2x1xf32>
    %364 = arith.addf %363, %362 : vector<2x1xf32>
    %365 = arith.divf %363, %364 : vector<2x1xf32>
    %c0_55 = arith.constant 0 : index
    %c0_56 = arith.constant 0 : index
    %366 = vector.load %arg10[%c0_55, %c0_56] : memref<2x1xf32, #tpu.memory_space<vmem>>, vector<2x1xf32>
    tpu.vector_store %arg10[%c0_55, %c0_56], %365 {strides = array<i32>} : memref<2x1xf32, #tpu.memory_space<vmem>>, vector<2x1xf32>,
    %367 = tpu.concatenate %309, %351 in 1 : vector<2x32xf32>, vector<2x32xf32> -> vector<2x64xf32>
    %c0_57 = arith.constant 0 : index
    %c0_58 = arith.constant 0 : index
    %368 = vector.load %arg11[%c0_57, %c0_58] : memref<2x64xf32, #tpu.memory_space<vmem>>, vector<2x64xf32>
    tpu.vector_store %arg11[%c0_57, %c0_58], %367 {strides = array<i32>} : memref<2x64xf32, #tpu.memory_space<vmem>>, vector<2x64xf32>,
    %369 = tpu.concatenate %307, %349 in 1 : vector<2x32xf32>, vector<2x32xf32> -> vector<2x64xf32>
    %c0_59 = arith.constant 0 : index
    %c0_60 = arith.constant 0 : index
    %370 = vector.load %arg12[%c0_59, %c0_60] : memref<2x64xf32, #tpu.memory_space<vmem>>, vector<2x64xf32>
    tpu.vector_store %arg12[%c0_59, %c0_60], %369 {strides = array<i32>} : memref<2x64xf32, #tpu.memory_space<vmem>>, vector<2x64xf32>,
    return
  }
}

</mosaic_0001>

<llo_original>
// kernel: stock_lstm_forward.1
$region0: #{stock_lstm_forward.1}
  #allocation0 [shape = 'u32[]', space=smem, size = 0x4, offset = 0x4, fixed_abs, tag = 'smem constant byte address 0x4 - core index']
  #allocation1 [shape = 'u32[144,128]{1,0:T(1,128)}', space=vmem, size = 0x12000, scoped, tag = 'internal scratch']
  #allocation2 [shape = 'f32[1,1]{1,0:T(1,128)S(1)}', space=vmem, size = 0x200, scoped, tag = 'scoped memory for stock_lstm_forward.1']
  %s0 = inlined_call_operand.vmem [shape: f32[2,8,4], index: 0, kind: input, shape index: {}]
  %s1 = inlined_call_operand.hbm [shape: f32[4,128], index: 1, kind: input, shape index: {}]
  %s2 = inlined_call_operand.vmem [shape: f32[32,128], index: 2, kind: input, shape index: {}]
  %s3 = inlined_call_operand.vmem [shape: f32[1,128], index: 3, kind: input, shape index: {}]
  %s4 = inlined_call_operand.hbm [shape: f32[64,128], index: 4, kind: input, shape index: {}]
  %s5 = inlined_call_operand.vmem [shape: f32[1,128], index: 5, kind: input, shape index: {}]
  %s6 = inlined_call_operand.vmem [shape: f32[2,64], index: 6, kind: input, shape index: {}, may-alias: {6,11}]
  %s7 = inlined_call_operand.vmem [shape: f32[2,64], index: 7, kind: input, shape index: {}, may-alias: {7,12}]
  %s8 = inlined_call_operand.vmem [shape: f32[8,32], index: 8, kind: input, shape index: {}]
  %s9 = inlined_call_operand.<no memory space> [shape: f32[1,1], index: 9, kind: input, shape index: {}]
  %s10 = inlined_call_operand.vmem [shape: f32[2,1], index: 10, kind: output, shape index: {0}]
  %s11 = inlined_call_operand.vmem [shape: f32[2,64], index: 11, kind: output, shape index: {1}, may-alias: {6,11}]
  %s12 = inlined_call_operand.vmem [shape: f32[2,64], index: 12, kind: output, shape index: {2}, may-alias: {7,12}]
  %13 = xla_tuple %s10, %s11, %s12
  %s14 = sld [smem:[#allocation0]]
  $region74: #{stock_lstm_forward.1} parent=0
    _
  %s16 = ssub.s32 1, %s14
  %s17 = scalar_select 0, %s16, %s14
  %v18 = vstv %s9
  %19 = vst [vmem:[#allocation2] sm:$0x1] %v18
  $region1: #{stock_lstm_forward.1} parent=0
    #allocation3 [shape = 'u8[2048]{0}', space=vmem, size = 0x800, scoped, tag = 'input window, operand 1, single buffered']
    #allocation4 [shape = 's32[1]{0}', space=sflag, size = 0x4, scoped, tag = 'scoped memory for stock_lstm_forward.1']
    #allocation5 [shape = 'u8[32768]{0}', space=vmem, size = 0x8000, scoped, tag = 'input window, operand 4, single buffered']
    #allocation6 [shape = 's32[1]{0}', space=sflag, size = 0x4, scoped, tag = 'scoped memory for stock_lstm_forward.1']
    %20 = vsyncpa [#allocation4], 0
    %21 = vsyncpa [#allocation6], 0
    // Predicated region
    $region2: #{stock_lstm_forward.1} parent=1 // pred_check
      _
    $region3: #{stock_lstm_forward.1} parent=1 // pred_check_branch
      %23 = sbr.rel (0) target = $region5
    $region4: #{stock_lstm_forward.1} parent=1 // pred_region
      _
    $region5: #{stock_lstm_forward.1} parent=1 // pred_fallthru
      _
    // Predicated region
    $region6: #{stock_lstm_forward.1} parent=1 // pred_check
      _
    $region7: #{stock_lstm_forward.1} parent=1 // pred_check_branch
      %25 = sbr.rel (0) target = $region9
    $region8: #{stock_lstm_forward.1} parent=1 // pred_region
      %s27 = ssub.s32 64, 64
      %28 = vsyncadd [#allocation4], %s27
      %s30 = sshll.u32 [#allocation3], 4
      %s31 = int_to_ptr.vmem [resolvable:$true] %s30
      %33 = dma.hbm_to_vmem [thread:$0]  %s1, 64, %s31, [#allocation4]
    $region9: #{stock_lstm_forward.1} parent=1 // pred_fallthru
      _
    // Predicated region
    $region10: #{stock_lstm_forward.1} parent=1 // pred_check
      _
    $region11: #{stock_lstm_forward.1} parent=1 // pred_check_branch
      %35 = sbr.rel (0) target = $region13
    $region12: #{stock_lstm_forward.1} parent=1 // pred_region
      _
    $region13: #{stock_lstm_forward.1} parent=1 // pred_fallthru
      _
    // Predicated region
    $region14: #{stock_lstm_forward.1} parent=1 // pred_check
      _
    $region15: #{stock_lstm_forward.1} parent=1 // pred_check_branch
      %37 = sbr.rel (0) target = $region17
    $region16: #{stock_lstm_forward.1} parent=1 // pred_region
      _
    $region17: #{stock_lstm_forward.1} parent=1 // pred_fallthru
      _
    // Predicated region
    $region18: #{stock_lstm_forward.1} parent=1 // pred_check
      _
    $region19: #{stock_lstm_forward.1} parent=1 // pred_check_branch
      %39 = sbr.rel (0) target = $region21
    $region20: #{stock_lstm_forward.1} parent=1 // pred_region
      %s41 = ssub.s32 1024, 1024
      %42 = vsyncadd [#allocation6], %s41
      %s43 = sshll.u32 [#allocation5], 4
      %s44 = int_to_ptr.vmem [resolvable:$true] %s43
      %49 = dma.hbm_to_vmem [thread:$0]  %s4, 1024, %s44, [#allocation6], 128, 128, 8
    $region21: #{stock_lstm_forward.1} parent=1 // pred_fallthru
      _
    // Predicated region
    $region22: #{stock_lstm_forward.1} parent=1 // pred_check
      _
    $region23: #{stock_lstm_forward.1} parent=1 // pred_check_branch
      %51 = sbr.rel (0) target = $region25
    $region24: #{stock_lstm_forward.1} parent=1 // pred_region
      _
    $region25: #{stock_lstm_forward.1} parent=1 // pred_fallthru
      _
    // Predicated region
    $region26: #{stock_lstm_forward.1} parent=1 // pred_check
      _
    $region27: #{stock_lstm_forward.1} parent=1 // pred_check_branch
      %53 = sbr.rel (0) target = $region29
    $region28: #{stock_lstm_forward.1} parent=1 // pred_region
      _
    $region29: #{stock_lstm_forward.1} parent=1 // pred_fallthru
      _
    // Predicated region
    $region30: #{stock_lstm_forward.1} parent=1 // pred_check
      _
    $region31: #{stock_lstm_forward.1} parent=1 // pred_check_branch
      %55 = sbr.rel (0) target = $region33
    $region32: #{stock_lstm_forward.1} parent=1 // pred_region
      _
    $region33: #{stock_lstm_forward.1} parent=1 // pred_fallthru
      _
    // Predicated region
    $region34: #{stock_lstm_forward.1} parent=1 // pred_check
      _
    $region35: #{stock_lstm_forward.1} parent=1 // pred_check_branch
      %57 = sbr.rel (0) target = $region37
    $region36: #{stock_lstm_forward.1} parent=1 // pred_region
      _
    $region37: #{stock_lstm_forward.1} parent=1 // pred_fallthru
      _
    // Predicated region
    $region38: #{stock_lstm_forward.1} parent=1 // pred_check
      _
    $region39: #{stock_lstm_forward.1} parent=1 // pred_check_branch
      %59 = sbr.rel (0) target = $region41
    $region40: #{stock_lstm_forward.1} parent=1 // pred_region
      _
    $region41: #{stock_lstm_forward.1} parent=1 // pred_fallthru
      _
    // Predicated region
    $region42: #{stock_lstm_forward.1} parent=1 // pred_check
      _
    $region43: #{stock_lstm_forward.1} parent=1 // pred_check_branch
      %61 = sbr.rel (0) target = $region45
    $region44: #{stock_lstm_forward.1} parent=1 // pred_region
      %62 = dma.done [#allocation4], 64
    $region45: #{stock_lstm_forward.1} parent=1 // pred_fallthru
      _
    // Predicated region
    $region46: #{stock_lstm_forward.1} parent=1 // pred_check
      _
    $region47: #{stock_lstm_forward.1} parent=1 // pred_check_branch
      %64 = sbr.rel (0) target = $region49
    $region48: #{stock_lstm_forward.1} parent=1 // pred_region
      %65 = dma.done [#allocation6], 1024
    $region49: #{stock_lstm_forward.1} parent=1 // pred_fallthru
      _
    %v66 = vld [vmem:[%s6] sm:$0x3]
    %v67 = vld [vmem:[%s7] sm:$0x3]
    %v68 = vld [vmem:[%s0] sm:$0xff]
    %v69 = vld [vmem:[%s0 + $0x8] sm:$0xff]
    %v70 = vld [vmem:[#allocation3] sm:$0xf]
    %vm71 = vcmask 31744
    %v73 = vsel %vm71, %v68, 0
    %v76 = vsel %vm71, %v69, 0
    %vm78 = vcmask 1043456
    %v80 = vsel %vm78, %v70, 0
    %82 = vmatprep.subr.mxu0 0.0
    %83 = vmatpush1.msra.mxu0 %v80
    %84 = vmatprep.subr.mxu0 0.0
    %85 = vmatpush1.msra.mxu0 0.0
    %86 = vmatprep.subr.mxu0 0.0
    %87 = vmatpush1.msra.mxu0 0.0
    %88 = vmatprep.subr.mxu0 0.0
    %89 = vmatpush1.msra.mxu0 0.0
    %90 = vmatprep.subr.mxu0 0.0
    %91 = vmatpush1.msra.mxu0 0.0
    %92 = vmatprep.subr.mxu0 0.0
    %93 = vmatpush1.msra.mxu0 0.0
    %94 = vmatprep.subr.mxu0 0.0
    %95 = vmatpush1.msra.mxu0 0.0
    %96 = vmatprep.subr.mxu0 0.0
    %97 = vmatpush1.msra.mxu0 0.0
    %98 = vmatprep.subr.mxu0 0.0
    %99 = vmatpush1.msra.mxu0 0.0
    %100 = vmatprep.subr.mxu0 0.0
    %101 = vmatpush1.msra.mxu0 0.0
    %102 = vmatprep.subr.mxu0 0.0
    %103 = vmatpush1.msra.mxu0 0.0
    %104 = vmatprep.subr.mxu0 0.0
    %105 = vmatpush1.msra.mxu0 0.0
    %106 = vmatprep.subr.mxu0 0.0
    %107 = vmatpush1.msra.mxu0 0.0
    %108 = vmatprep.subr.mxu0 0.0
    %109 = vmatpush1.msra.mxu0 0.0
    %110 = vmatprep.subr.mxu0 0.0
    %111 = vmatpush1.msra.mxu0 0.0
    %112 = vmatprep.subr.mxu0 0.0
    %113 = vmatpush1.msra.mxu0 0.0
    %114 = vmatprep.subr.mxu0 0.0
    %115 = vmatpush1.msra.mxu0 0.0
    %116 = vmatprep.subr.mxu0 0.0
    %117 = vmatpush1.msra.mxu0 0.0
    %118 = vmatprep.subr.mxu0 0.0
    %119 = vmatpush1.msra.mxu0 0.0
    %120 = vmatprep.subr.mxu0 0.0
    %121 = vmatpush1.msra.mxu0 0.0
    %122 = vmatprep.subr.mxu0 0.0
    %123 = vmatpush1.msra.mxu0 0.0
    %124 = vmatprep.subr.mxu0 0.0
    %125 = vmatpush1.msra.mxu0 0.0
    %126 = vmatprep.subr.mxu0 0.0
    %127 = vmatpush1.msra.mxu0 0.0
    %128 = vmatprep.subr.mxu0 0.0
    %129 = vmatpush1.msra.mxu0 0.0
    %130 = vmatprep.subr.mxu0 0.0
    %131 = vmatpush1.msra.mxu0 0.0
    %132 = vmatprep.subr.mxu0 0.0
    %133 = vmatpush1.msra.mxu0 0.0
    %134 = vmatprep.subr.mxu0 0.0
    %135 = vmatpush1.msra.mxu0 0.0
    %136 = vmatprep.subr.mxu0 0.0
    %137 = vmatpush1.msra.mxu0 0.0
    %138 = vmatprep.subr.mxu0 0.0
    %139 = vmatpush1.msra.mxu0 0.0
    %140 = vmatprep.subr.mxu0 0.0
    %141 = vmatpush1.msra.mxu0 0.0
    %142 = vmatprep.subr.mxu0 0.0
    %143 = vmatpush1.msra.mxu0 0.0
    %144 = vmatprep.subr.mxu0 0.0
    %145 = vmatpush1.msra.mxu0 0.0
    %146 = vmatprep.mubr.f32.mxu0 0.0
    %147 = vmatmul.mubr.f32.gmra.mrb[0].mxu0 %v73
    %v148 = vpop.f32.mrb[0].mxu0
    %v149 = vadd.f32 0.0, %v148
    %v150 = vpop.f32.mrb[0].mxu0
    %151 = vmatprep.mubr.f32.mxu0 0.0
    %152 = vmatmul.mubr.f32.gmra.mrb[0].mxu0 %v76
    %v153 = vpop.f32.mrb[0].mxu0
    %v154 = vadd.f32 0.0, %v153
    %v155 = vpop.f32.mrb[0].mxu0
    %156 = vdwg.mxu0
    %v157 = vld [vmem:[%s3] sm:$0x1]
    %v159 = vlaneseq
    %v160 = vshrl.u32 %v159, 7
    %v161 = vsub.s32 0, %v160
    %v162 = vrot.slane %v157, %v161
    %v164 = vadd.f32 %v149, %v162
    %v165 = vadd.f32 %v154, %v162
    %v166 = vld [vmem:[%s2] sm:$0xff]
    %v167 = vld [vmem:[%s2 + $0x8] sm:$0xff]
    %v168 = vld [vmem:[%s2 + $0x10] sm:$0xff]
    %v169 = vld [vmem:[%s2 + $0x18] sm:$0xff]
    %v170 = vld [vmem:[#allocation5] sm:$0xff]
    %v171 = vld [vmem:[#allocation5 + $0x8] sm:$0xff]
    %v172 = vld [vmem:[#allocation5 + $0x10] sm:$0xff]
    %v173 = vld [vmem:[#allocation5 + $0x18] sm:$0xff]
    %v174 = vld [vmem:[#allocation5 + $0x20] sm:$0xff]
    %v175 = vld [vmem:[#allocation5 + $0x28] sm:$0xff]
    %v176 = vld [vmem:[#allocation5 + $0x30] sm:$0xff]
    %v177 = vld [vmem:[#allocation5 + $0x38] sm:$0xff]
    %v178 = vld [vmem:[%s5] sm:$0x1]
    %v179 = vld [vmem:[%s8] sm:$0xff]
    %vm180 = vcmask 261120
    %v182 = vsel %vm180, %v66, 0
    %184 = vmatprep.subr.mxu0 0.0
    %185 = vmatpush1.msra.mxu0 %v166
    %186 = vmatprep.subr.mxu0 0.0
    %187 = vmatpush1.msra.mxu0 %v167
    %188 = vmatprep.subr.mxu0 0.0
    %189 = vmatpush1.msra.mxu0 %v168
    %190 = vmatprep.subr.mxu0 0.0
    %191 = vmatpush1.msra.mxu0 %v169
    %192 = vmatprep.subr.mxu0 0.0
    %193 = vmatpush1.msra.mxu0 0.0
    %194 = vmatprep.subr.mxu0 0.0
    %195 = vmatpush1.msra.mxu0 0.0
    %196 = vmatprep.subr.mxu0 0.0
    %197 = vmatpush1.msra.mxu0 0.0
    %198 = vmatprep.subr.mxu0 0.0
    %199 = vmatpush1.msra.mxu0 0.0
    %200 = vmatprep.subr.mxu0 0.0
    %201 = vmatpush1.msra.mxu0 0.0
    %202 = vmatprep.subr.mxu0 0.0
    %203 = vmatpush1.msra.mxu0 0.0
    %204 = vmatprep.subr.mxu0 0.0
    %205 = vmatpush1.msra.mxu0 0.0
    %206 = vmatprep.subr.mxu0 0.0
    %207 = vmatpush1.msra.mxu0 0.0
    %208 = vmatprep.subr.mxu0 0.0
    %209 = vmatpush1.msra.mxu0 0.0
    %210 = vmatprep.subr.mxu0 0.0
    %211 = vmatpush1.msra.mxu0 0.0
    %212 = vmatprep.subr.mxu0 0.0
    %213 = vmatpush1.msra.mxu0 0.0
    %214 = vmatprep.subr.mxu0 0.0
    %215 = vmatpush1.msra.mxu0 0.0
    %216 = vmatprep.subr.mxu0 0.0
    %217 = vmatpush1.msra.mxu0 0.0
    %218 = vmatprep.subr.mxu0 0.0
    %219 = vmatpush1.msra.mxu0 0.0
    %220 = vmatprep.subr.mxu0 0.0
    %221 = vmatpush1.msra.mxu0 0.0
    %222 = vmatprep.subr.mxu0 0.0
    %223 = vmatpush1.msra.mxu0 0.0
    %224 = vmatprep.subr.mxu0 0.0
    %225 = vmatpush1.msra.mxu0 0.0
    %226 = vmatprep.subr.mxu0 0.0
    %227 = vmatpush1.msra.mxu0 0.0
    %228 = vmatprep.subr.mxu0 0.0
    %229 = vmatpush1.msra.mxu0 0.0
    %230 = vmatprep.subr.mxu0 0.0
    %231 = vmatpush1.msra.mxu0 0.0
    %232 = vmatprep.subr.mxu0 0.0
    %233 = vmatpush1.msra.mxu0 0.0
    %234 = vmatprep.subr.mxu0 0.0
    %235 = vmatpush1.msra.mxu0 0.0
    %236 = vmatprep.subr.mxu0 0.0
    %237 = vmatpush1.msra.mxu0 0.0
    %238 = vmatprep.subr.mxu0 0.0
    %239 = vmatpush1.msra.mxu0 0.0
    %240 = vmatprep.subr.mxu0 0.0
    %241 = vmatpush1.msra.mxu0 0.0
    %242 = vmatprep.subr.mxu0 0.0
    %243 = vmatpush1.msra.mxu0 0.0
    %244 = vmatprep.subr.mxu0 0.0
    %245 = vmatpush1.msra.mxu0 0.0
    %246 = vmatprep.subr.mxu0 0.0
    %247 = vmatpush1.msra.mxu0 0.0
    %248 = vmatprep.mubr.f32.mxu0 0.0
    %249 = vmatmul.mubr.f32.gmra.mrb[0].mxu0 %v182
    %v250 = vpop.f32.mrb[0].mxu0
    %v251 = vadd.f32 0.0, %v250
    %v252 = vpop.f32.mrb[0].mxu0
    %253 = vdwg.mxu0
    %v255 = vrot.slane %v251, 1
    %v258 = vadd.f32 %v164, %v251
    %v259 = vadd.f32 %v165, %v255
    %v260 = vxor.u32 %v258, 2147483648
    %v261 = vxor.u32 %v259, 2147483648
    %v262 = vmul.f32 %v260, 1.442695
    %v263 = vpow.pop %v262
    %v264 = vmul.f32 %v261, 1.442695
    %v265 = vpow.pop %v264
    %v266 = vadd.f32 %v263, 1.0
    %v267 = vadd.f32 %v265, 1.0
    %v268 = vrcp.pop %v266
    %v269 = vmul.f32 1.0, %v268
    %v270 = vrcp.pop %v267
    %v271 = vmul.f32 1.0, %v270
    %v272 = vtanh.pop %v258
    %v273 = vtanh.pop %v259
    %v275 = vrot.slane %v67, 1
    %276 = vrot.lane.b32.xlu0 %v67, 32
    %v277 = vpop.permute.xlu0 %276
    %278 = vrot.lane.b32.xlu0 %v275, 32
    %v279 = vpop.permute.xlu0 %278
    %v282 = vmul.f32 %v269, %v277
    %v283 = vmul.f32 %v271, %v279
    %286 = vrot.lane.b32.xlu0 %v272, 64
    %v287 = vpop.permute.xlu0 %286
    %288 = vrot.lane.b32.xlu0 %v273, 64
    %v289 = vpop.permute.xlu0 %288
    %v292 = vmul.f32 %v269, %v287
    %v293 = vmul.f32 %v271, %v289
    %296 = vrot.lane.b32.xlu0 %v292, 32
    %v297 = vpop.permute.xlu0 %296
    %298 = vrot.lane.b32.xlu0 %v293, 32
    %v299 = vpop.permute.xlu0 %298
    %v302 = vadd.f32 %v282, %v297
    %v303 = vadd.f32 %v283, %v299
    %v304 = vtanh.pop %v302
    %v305 = vtanh.pop %v303
    %308 = vrot.lane.b32.xlu0 %v304, 64
    %v309 = vpop.permute.xlu0 %308
    %310 = vrot.lane.b32.xlu0 %v305, 64
    %v311 = vpop.permute.xlu0 %310
    %v314 = vmul.f32 %v269, %v309
    %v315 = vmul.f32 %v271, %v311
    %v318 = vrot.slane %v315, 7
    %vm319 = vcmask 1041409
    %v320 = vsel %vm319, %v318, %v314
    %321 = vrot.lane.b32.xlu0 %v320, 32
    %v322 = vpop.permute.xlu0 %321
    %v323 = vsel %vm180, %v322, 0
    %325 = vmatprep.subr.mxu0 0.0
    %326 = vmatpush1.msra.mxu0 %v166
    %327 = vmatprep.subr.mxu0 0.0
    %328 = vmatpush1.msra.mxu0 %v167
    %329 = vmatprep.subr.mxu0 0.0
    %330 = vmatpush1.msra.mxu0 %v168
    %331 = vmatprep.subr.mxu0 0.0
    %332 = vmatpush1.msra.mxu0 %v169
    %333 = vmatprep.subr.mxu0 0.0
    %334 = vmatpush1.msra.mxu0 0.0
    %335 = vmatprep.subr.mxu0 0.0
    %336 = vmatpush1.msra.mxu0 0.0
    %337 = vmatprep.subr.mxu0 0.0
    %338 = vmatpush1.msra.mxu0 0.0
    %339 = vmatprep.subr.mxu0 0.0
    %340 = vmatpush1.msra.mxu0 0.0
    %341 = vmatprep.subr.mxu0 0.0
    %342 = vmatpush1.msra.mxu0 0.0
    %343 = vmatprep.subr.mxu0 0.0
    %344 = vmatpush1.msra.mxu0 0.0
    %345 = vmatprep.subr.mxu0 0.0
    %346 = vmatpush1.msra.mxu0 0.0
    %347 = vmatprep.subr.mxu0 0.0
    %348 = vmatpush1.msra.mxu0 0.0
    %349 = vmatprep.subr.mxu0 0.0
    %350 = vmatpush1.msra.mxu0 0.0
    %351 = vmatprep.subr.mxu0 0.0
    %352 = vmatpush1.msra.mxu0 0.0
    %353 = vmatprep.subr.mxu0 0.0
    %354 = vmatpush1.msra.mxu0 0.0
    %355 = vmatprep.subr.mxu0 0.0
    %356 = vmatpush1.msra.mxu0 0.0
    %357 = vmatprep.subr.mxu0 0.0
    %358 = vmatpush1.msra.mxu0 0.0
    %359 = vmatprep.subr.mxu0 0.0
    %360 = vmatpush1.msra.mxu0 0.0
    %361 = vmatprep.subr.mxu0 0.0
    %362 = vmatpush1.msra.mxu0 0.0
    %363 = vmatprep.subr.mxu0 0.0
    %364 = vmatpush1.msra.mxu0 0.0
    %365 = vmatprep.subr.mxu0 0.0
    %366 = vmatpush1.msra.mxu0 0.0
    %367 = vmatprep.subr.mxu0 0.0
    %368 = vmatpush1.msra.mxu0 0.0
    %369 = vmatprep.subr.mxu0 0.0
    %370 = vmatpush1.msra.mxu0 0.0
    %371 = vmatprep.subr.mxu0 0.0
    %372 = vmatpush1.msra.mxu0 0.0
    %373 = vmatprep.subr.mxu0 0.0
    %374 = vmatpush1.msra.mxu0 0.0
    %375 = vmatprep.subr.mxu0 0.0
    %376 = vmatpush1.msra.mxu0 0.0
    %377 = vmatprep.subr.mxu0 0.0
    %378 = vmatpush1.msra.mxu0 0.0
    %379 = vmatprep.subr.mxu0 0.0
    %380 = vmatpush1.msra.mxu0 0.0
    %381 = vmatprep.subr.mxu0 0.0
    %382 = vmatpush1.msra.mxu0 0.0
    %383 = vmatprep.subr.mxu0 0.0
    %384 = vmatpush1.msra.mxu0 0.0
    %385 = vmatprep.subr.mxu0 0.0
    %386 = vmatpush1.msra.mxu0 0.0
    %387 = vmatprep.subr.mxu0 0.0
    %388 = vmatpush1.msra.mxu0 0.0
    %389 = vmatprep.mubr.f32.mxu0 0.0
    %390 = vmatmul.mubr.f32.gmra.mrb[0].mxu0 %v323
    %v391 = vpop.f32.mrb[0].mxu0
    %v392 = vadd.f32 0.0, %v391
    %v393 = vpop.f32.mrb[0].mxu0
    %394 = vdwg.mxu0
    %v396 = vrot.slane %v392, 7
    %v399 = vadd.f32 %v164, %v396
    %v400 = vadd.f32 %v165, %v392
    %v401 = vxor.u32 %v399, 2147483648
    %v402 = vxor.u32 %v400, 2147483648
    %v403 = vmul.f32 %v401, 1.442695
    %v404 = vpow.pop %v403
    %v405 = vmul.f32 %v402, 1.442695
    %v406 = vpow.pop %v405
    %v407 = vadd.f32 %v404, 1.0
    %v408 = vadd.f32 %v406, 1.0
    %v409 = vrcp.pop %v407
    %v410 = vmul.f32 1.0, %v409
    %v411 = vrcp.pop %v408
    %v412 = vmul.f32 1.0, %v411
    %v413 = vtanh.pop %v399
    %v414 = vtanh.pop %v400
    %v417 = vrot.slane %v302, 7
    %v418 = vrot.slane %v303, 7
    %v421 = vmul.f32 %v410, %v417
    %v422 = vmul.f32 %v412, %v418
    %425 = vrot.lane.b32.xlu0 %v413, 64
    %v426 = vpop.permute.xlu0 %425
    %427 = vrot.lane.b32.xlu0 %v414, 64
    %v428 = vpop.permute.xlu0 %427
    %v431 = vmul.f32 %v410, %v426
    %v432 = vmul.f32 %v412, %v428
    %435 = vrot.lane.b32.xlu0 %v431, 32
    %v436 = vpop.permute.xlu0 %435
    %437 = vrot.lane.b32.xlu0 %v432, 32
    %v438 = vpop.permute.xlu0 %437
    %v441 = vadd.f32 %v421, %v436
    %v442 = vadd.f32 %v422, %v438
    %v443 = vtanh.pop %v441
    %v444 = vtanh.pop %v442
    %447 = vrot.lane.b32.xlu0 %v443, 64
    %v448 = vpop.permute.xlu0 %447
    %449 = vrot.lane.b32.xlu0 %v444, 64
    %v450 = vpop.permute.xlu0 %449
    %v453 = vmul.f32 %v410, %v448
    %v454 = vmul.f32 %v412, %v450
    %v456 = vsel %vm180, %v322, %v66
    %v458 = vlaneseq
    %v459 = vshrl.u32 %v458, 7
    %v460 = vsub.s32 0, %v459
    %v461 = vrot.slane %v178, %v460
    %vm463 = vcmask 523264
    %v465 = vsel %vm463, %v456, 0
    %467 = vmatprep.subr.mxu0 0.0
    %468 = vmatpush1.msra.mxu0 %v170
    %469 = vmatprep.subr.mxu0 0.0
    %470 = vmatpush1.msra.mxu0 %v171
    %471 = vmatprep.subr.mxu0 0.0
    %472 = vmatpush1.msra.mxu0 %v172
    %473 = vmatprep.subr.mxu0 0.0
    %474 = vmatpush1.msra.mxu0 %v173
    %475 = vmatprep.subr.mxu0 0.0
    %476 = vmatpush1.msra.mxu0 %v174
    %477 = vmatprep.subr.mxu0 0.0
    %478 = vmatpush1.msra.mxu0 %v175
    %479 = vmatprep.subr.mxu0 0.0
    %480 = vmatpush1.msra.mxu0 %v176
    %481 = vmatprep.subr.mxu0 0.0
    %482 = vmatpush1.msra.mxu0 %v177
    %483 = vmatprep.subr.mxu0 0.0
    %484 = vmatpush1.msra.mxu0 0.0
    %485 = vmatprep.subr.mxu0 0.0
    %486 = vmatpush1.msra.mxu0 0.0
    %487 = vmatprep.subr.mxu0 0.0
    %488 = vmatpush1.msra.mxu0 0.0
    %489 = vmatprep.subr.mxu0 0.0
    %490 = vmatpush1.msra.mxu0 0.0
    %491 = vmatprep.subr.mxu0 0.0
    %492 = vmatpush1.msra.mxu0 0.0
    %493 = vmatprep.subr.mxu0 0.0
    %494 = vmatpush1.msra.mxu0 0.0
    %495 = vmatprep.subr.mxu0 0.0
    %496 = vmatpush1.msra.mxu0 0.0
    %497 = vmatprep.subr.mxu0 0.0
    %498 = vmatpush1.msra.mxu0 0.0
    %499 = vmatprep.subr.mxu0 0.0
    %500 = vmatpush1.msra.mxu0 0.0
    %501 = vmatprep.subr.mxu0 0.0
    %502 = vmatpush1.msra.mxu0 0.0
    %503 = vmatprep.subr.mxu0 0.0
    %504 = vmatpush1.msra.mxu0 0.0
    %505 = vmatprep.subr.mxu0 0.0
    %506 = vmatpush1.msra.mxu0 0.0
    %507 = vmatprep.subr.mxu0 0.0
    %508 = vmatpush1.msra.mxu0 0.0
    %509 = vmatprep.subr.mxu0 0.0
    %510 = vmatpush1.msra.mxu0 0.0
    %511 = vmatprep.subr.mxu0 0.0
    %512 = vmatpush1.msra.mxu0 0.0
    %513 = vmatprep.subr.mxu0 0.0
    %514 = vmatpush1.msra.mxu0 0.0
    %515 = vmatprep.subr.mxu0 0.0
    %516 = vmatpush1.msra.mxu0 0.0
    %517 = vmatprep.subr.mxu0 0.0
    %518 = vmatpush1.msra.mxu0 0.0
    %519 = vmatprep.subr.mxu0 0.0
    %520 = vmatpush1.msra.mxu0 0.0
    %521 = vmatprep.subr.mxu0 0.0
    %522 = vmatpush1.msra.mxu0 0.0
    %523 = vmatprep.subr.mxu0 0.0
    %524 = vmatpush1.msra.mxu0 0.0
    %525 = vmatprep.subr.mxu0 0.0
    %526 = vmatpush1.msra.mxu0 0.0
    %527 = vmatprep.subr.mxu0 0.0
    %528 = vmatpush1.msra.mxu0 0.0
    %529 = vmatprep.subr.mxu0 0.0
    %530 = vmatpush1.msra.mxu0 0.0
    %531 = vmatprep.mubr.f32.mxu0 0.0
    %532 = vmatmul.mubr.f32.gmra.mrb[0].mxu0 %v465
    %v533 = vpop.f32.mrb[0].mxu0
    %v534 = vadd.f32 %v461, %v533
    %v535 = vpop.f32.mrb[0].mxu0
    %536 = vdwg.mxu0
    %v537 = vxor.u32 %v534, 2147483648
    %v538 = vmul.f32 %v537, 1.442695
    %v539 = vpow.pop %v538
    %v540 = vadd.f32 %v539, 1.0
    %v541 = vrcp.pop %v540
    %v542 = vmul.f32 1.0, %v541
    %v543 = vtanh.pop %v534
    %v544 = vmul.f32 %v542, %v67
    %546 = vrot.lane.b32.xlu0 %v543, 64
    %v547 = vpop.permute.xlu0 %546
    %v549 = vmul.f32 %v542, %v547
    %551 = vrot.lane.b32.xlu0 %v549, 32
    %v552 = vpop.permute.xlu0 %551
    %v554 = vadd.f32 %v544, %v552
    %v555 = vtanh.pop %v554
    %557 = vrot.lane.b32.xlu0 %v555, 64
    %v558 = vpop.permute.xlu0 %557
    %v560 = vmul.f32 %v542, %v558
    %v561 = vlaneseq
    %v562 = vshrl.u32 %v561, 7
    %v563 = vsub.s32 0, %v562
    %v564 = vrot.slane %v179, %v563
    %566 = vrot.lane.b32.xlu0 %v564, 96
    %v567 = vpop.permute.xlu0 %566
    %v569 = vmul.f32 %v560, %v567
    %v570 = vadd.f32 %v569, 0.0
    %v573 = vrot.slane %v453, 1
    %v574 = vsel %vm319, %v454, %v573
    %575 = vrot.lane.b32.xlu0 %v574, 32
    %v576 = vpop.permute.xlu0 %575
    %v577 = vsel %vm180, %v576, 0
    %579 = vmatprep.subr.mxu0 0.0
    %580 = vmatpush1.msra.mxu0 %v166
    %581 = vmatprep.subr.mxu0 0.0
    %582 = vmatpush1.msra.mxu0 %v167
    %583 = vmatprep.subr.mxu0 0.0
    %584 = vmatpush1.msra.mxu0 %v168
    %585 = vmatprep.subr.mxu0 0.0
    %586 = vmatpush1.msra.mxu0 %v169
    %587 = vmatprep.subr.mxu0 0.0
    %588 = vmatpush1.msra.mxu0 0.0
    %589 = vmatprep.subr.mxu0 0.0
    %590 = vmatpush1.msra.mxu0 0.0
    %591 = vmatprep.subr.mxu0 0.0
    %592 = vmatpush1.msra.mxu0 0.0
    %593 = vmatprep.subr.mxu0 0.0
    %594 = vmatpush1.msra.mxu0 0.0
    %595 = vmatprep.subr.mxu0 0.0
    %596 = vmatpush1.msra.mxu0 0.0
    %597 = vmatprep.subr.mxu0 0.0
    %598 = vmatpush1.msra.mxu0 0.0
    %599 = vmatprep.subr.mxu0 0.0
    %600 = vmatpush1.msra.mxu0 0.0
    %601 = vmatprep.subr.mxu0 0.0
    %602 = vmatpush1.msra.mxu0 0.0
    %603 = vmatprep.subr.mxu0 0.0
    %604 = vmatpush1.msra.mxu0 0.0
    %605 = vmatprep.subr.mxu0 0.0
    %606 = vmatpush1.msra.mxu0 0.0
    %607 = vmatprep.subr.mxu0 0.0
    %608 = vmatpush1.msra.mxu0 0.0
    %609 = vmatprep.subr.mxu0 0.0
    %610 = vmatpush1.msra.mxu0 0.0
    %611 = vmatprep.subr.mxu0 0.0
    %612 = vmatpush1.msra.mxu0 0.0
    %613 = vmatprep.subr.mxu0 0.0
    %614 = vmatpush1.msra.mxu0 0.0
    %615 = vmatprep.subr.mxu0 0.0
    %616 = vmatpush1.msra.mxu0 0.0
    %617 = vmatprep.subr.mxu0 0.0
    %618 = vmatpush1.msra.mxu0 0.0
    %619 = vmatprep.subr.mxu0 0.0
    %620 = vmatpush1.msra.mxu0 0.0
    %621 = vmatprep.subr.mxu0 0.0
    %622 = vmatpush1.msra.mxu0 0.0
    %623 = vmatprep.subr.mxu0 0.0
    %624 = vmatpush1.msra.mxu0 0.0
    %625 = vmatprep.subr.mxu0 0.0
    %626 = vmatpush1.msra.mxu0 0.0
    %627 = vmatprep.subr.mxu0 0.0
    %628 = vmatpush1.msra.mxu0 0.0
    %629 = vmatprep.subr.mxu0 0.0
    %630 = vmatpush1.msra.mxu0 0.0
    %631 = vmatprep.subr.mxu0 0.0
    %632 = vmatpush1.msra.mxu0 0.0
    %633 = vmatprep.subr.mxu0 0.0
    %634 = vmatpush1.msra.mxu0 0.0
    %635 = vmatprep.subr.mxu0 0.0
    %636 = vmatpush1.msra.mxu0 0.0
    %637 = vmatprep.subr.mxu0 0.0
    %638 = vmatpush1.msra.mxu0 0.0
    %639 = vmatprep.subr.mxu0 0.0
    %640 = vmatpush1.msra.mxu0 0.0
    %641 = vmatprep.subr.mxu0 0.0
    %642 = vmatpush1.msra.mxu0 0.0
    %643 = vmatprep.mubr.f32.mxu0 0.0
    %644 = vmatmul.mubr.f32.gmra.mrb[0].mxu0 %v577
    %v645 = vpop.f32.mrb[0].mxu0
    %v646 = vadd.f32 0.0, %v645
    %v647 = vpop.f32.mrb[0].mxu0
    %648 = vdwg.mxu0
    %v650 = vrot.slane %v646, 6
    %v651 = vrot.slane %v646, 7
    %v654 = vadd.f32 %v164, %v650
    %v655 = vadd.f32 %v165, %v651
    %v656 = vxor.u32 %v654, 2147483648
    %v657 = vxor.u32 %v655, 2147483648
    %v658 = vmul.f32 %v656, 1.442695
    %v659 = vpow.pop %v658
    %v660 = vmul.f32 %v657, 1.442695
    %v661 = vpow.pop %v660
    %v662 = vadd.f32 %v659, 1.0
    %v663 = vadd.f32 %v661, 1.0
    %v664 = vrcp.pop %v662
    %v665 = vmul.f32 1.0, %v664
    %v666 = vrcp.pop %v663
    %v667 = vmul.f32 1.0, %v666
    %v668 = vtanh.pop %v654
    %v669 = vtanh.pop %v655
    %v672 = vrot.slane %v441, 7
    %v673 = vrot.slane %v442, 7
    %v676 = vmul.f32 %v665, %v672
    %v677 = vmul.f32 %v667, %v673
    %680 = vrot.lane.b32.xlu0 %v668, 64
    %v681 = vpop.permute.xlu0 %680
    %682 = vrot.lane.b32.xlu0 %v669, 64
    %v683 = vpop.permute.xlu0 %682
    %v686 = vmul.f32 %v665, %v681
    %v687 = vmul.f32 %v667, %v683
    %690 = vrot.lane.b32.xlu0 %v686, 32
    %v691 = vpop.permute.xlu0 %690
    %692 = vrot.lane.b32.xlu0 %v687, 32
    %v693 = vpop.permute.xlu0 %692
    %v696 = vadd.f32 %v676, %v691
    %v697 = vadd.f32 %v677, %v693
    %v698 = vtanh.pop %v696
    %v699 = vtanh.pop %v697
    %702 = vrot.lane.b32.xlu0 %v698, 64
    %v703 = vpop.permute.xlu0 %702
    %704 = vrot.lane.b32.xlu0 %v699, 64
    %v705 = vpop.permute.xlu0 %704
    %v708 = vmul.f32 %v665, %v703
    %v709 = vmul.f32 %v667, %v705
    %v710 = vrot.slane %v454, 7
    %vm711 = vcmask 1042434
    %v712 = vsel %vm711, %v710, %v453
    %713 = vrot.lane.b32.xlu0 %v712, 32
    %v714 = vpop.permute.xlu0 %713
    %v717 = vrot.slane %v560, 7
    %718 = vrot.lane.b32.xlu0 %v717, 64
    %v719 = vpop.permute.xlu0 %718
    %v721 = vsel %vm180, %v714, %v719
    %v723 = vrot.slane %v721, 1
    %v724 = vsel %vm463, %v723, 0
    %726 = vmatprep.subr.mxu0 0.0
    %727 = vmatpush1.msra.mxu0 %v170
    %728 = vmatprep.subr.mxu0 0.0
    %729 = vmatpush1.msra.mxu0 %v171
    %730 = vmatprep.subr.mxu0 0.0
    %731 = vmatpush1.msra.mxu0 %v172
    %732 = vmatprep.subr.mxu0 0.0
    %733 = vmatpush1.msra.mxu0 %v173
    %734 = vmatprep.subr.mxu0 0.0
    %735 = vmatpush1.msra.mxu0 %v174
    %736 = vmatprep.subr.mxu0 0.0
    %737 = vmatpush1.msra.mxu0 %v175
    %738 = vmatprep.subr.mxu0 0.0
    %739 = vmatpush1.msra.mxu0 %v176
    %740 = vmatprep.subr.mxu0 0.0
    %741 = vmatpush1.msra.mxu0 %v177
    %742 = vmatprep.subr.mxu0 0.0
    %743 = vmatpush1.msra.mxu0 0.0
    %744 = vmatprep.subr.mxu0 0.0
    %745 = vmatpush1.msra.mxu0 0.0
    %746 = vmatprep.subr.mxu0 0.0
    %747 = vmatpush1.msra.mxu0 0.0
    %748 = vmatprep.subr.mxu0 0.0
    %749 = vmatpush1.msra.mxu0 0.0
    %750 = vmatprep.subr.mxu0 0.0
    %751 = vmatpush1.msra.mxu0 0.0
    %752 = vmatprep.subr.mxu0 0.0
    %753 = vmatpush1.msra.mxu0 0.0
    %754 = vmatprep.subr.mxu0 0.0
    %755 = vmatpush1.msra.mxu0 0.0
    %756 = vmatprep.subr.mxu0 0.0
    %757 = vmatpush1.msra.mxu0 0.0
    %758 = vmatprep.subr.mxu0 0.0
    %759 = vmatpush1.msra.mxu0 0.0
    %760 = vmatprep.subr.mxu0 0.0
    %761 = vmatpush1.msra.mxu0 0.0
    %762 = vmatprep.subr.mxu0 0.0
    %763 = vmatpush1.msra.mxu0 0.0
    %764 = vmatprep.subr.mxu0 0.0
    %765 = vmatpush1.msra.mxu0 0.0
    %766 = vmatprep.subr.mxu0 0.0
    %767 = vmatpush1.msra.mxu0 0.0
    %768 = vmatprep.subr.mxu0 0.0
    %769 = vmatpush1.msra.mxu0 0.0
    %770 = vmatprep.subr.mxu0 0.0
    %771 = vmatpush1.msra.mxu0 0.0
    %772 = vmatprep.subr.mxu0 0.0
    %773 = vmatpush1.msra.mxu0 0.0
    %774 = vmatprep.subr.mxu0 0.0
    %775 = vmatpush1.msra.mxu0 0.0
    %776 = vmatprep.subr.mxu0 0.0
    %777 = vmatpush1.msra.mxu0 0.0
    %778 = vmatprep.subr.mxu0 0.0
    %779 = vmatpush1.msra.mxu0 0.0
    %780 = vmatprep.subr.mxu0 0.0
    %781 = vmatpush1.msra.mxu0 0.0
    %782 = vmatprep.subr.mxu0 0.0
    %783 = vmatpush1.msra.mxu0 0.0
    %784 = vmatprep.subr.mxu0 0.0
    %785 = vmatpush1.msra.mxu0 0.0
    %786 = vmatprep.subr.mxu0 0.0
    %787 = vmatpush1.msra.mxu0 0.0
    %788 = vmatprep.subr.mxu0 0.0
    %789 = vmatpush1.msra.mxu0 0.0
    %790 = vmatprep.mubr.f32.mxu0 0.0
    %791 = vmatmul.mubr.f32.gmra.mrb[0].mxu0 %v724
    %v792 = vpop.f32.mrb[0].mxu0
    %v793 = vadd.f32 %v461, %v792
    %v794 = vpop.f32.mrb[0].mxu0
    %795 = vdwg.mxu0
    %v796 = vxor.u32 %v793, 2147483648
    %v797 = vmul.f32 %v796, 1.442695
    %v798 = vpow.pop %v797
    %v799 = vadd.f32 %v798, 1.0
    %v800 = vrcp.pop %v799
    %v801 = vmul.f32 1.0, %v800
    %v802 = vtanh.pop %v793
    %v803 = vmul.f32 %v801, %v554
    %805 = vrot.lane.b32.xlu0 %v802, 64
    %v806 = vpop.permute.xlu0 %805
    %v808 = vmul.f32 %v801, %v806
    %810 = vrot.lane.b32.xlu0 %v808, 32
    %v811 = vpop.permute.xlu0 %810
    %v813 = vadd.f32 %v803, %v811
    %v814 = vtanh.pop %v813
    %816 = vrot.lane.b32.xlu0 %v814, 64
    %v817 = vpop.permute.xlu0 %816
    %v819 = vmul.f32 %v801, %v817
    %v820 = vlaneseq
    %v821 = vshrl.u32 %v820, 7
    %v822 = vsub.s32 1, %v821
    %v823 = vrot.slane %v179, %v822
    %825 = vrot.lane.b32.xlu0 %v823, 96
    %v826 = vpop.permute.xlu0 %825
    %v828 = vmul.f32 %v819, %v826
    %v829 = vadd.f32 %v570, %v828
    %v832 = vrot.slane %v708, 2
    %v833 = vrot.slane %v709, 1
    %v834 = vsel %vm319, %v833, %v832
    %835 = vrot.lane.b32.xlu0 %v834, 32
    %v836 = vpop.permute.xlu0 %835
    %v837 = vsel %vm180, %v836, 0
    %839 = vmatprep.subr.mxu0 0.0
    %840 = vmatpush1.msra.mxu0 %v166
    %841 = vmatprep.subr.mxu0 0.0
    %842 = vmatpush1.msra.mxu0 %v167
    %843 = vmatprep.subr.mxu0 0.0
    %844 = vmatpush1.msra.mxu0 %v168
    %845 = vmatprep.subr.mxu0 0.0
    %846 = vmatpush1.msra.mxu0 %v169
    %847 = vmatprep.subr.mxu0 0.0
    %848 = vmatpush1.msra.mxu0 0.0
    %849 = vmatprep.subr.mxu0 0.0
    %850 = vmatpush1.msra.mxu0 0.0
    %851 = vmatprep.subr.mxu0 0.0
    %852 = vmatpush1.msra.mxu0 0.0
    %853 = vmatprep.subr.mxu0 0.0
    %854 = vmatpush1.msra.mxu0 0.0
    %855 = vmatprep.subr.mxu0 0.0
    %856 = vmatpush1.msra.mxu0 0.0
    %857 = vmatprep.subr.mxu0 0.0
    %858 = vmatpush1.msra.mxu0 0.0
    %859 = vmatprep.subr.mxu0 0.0
    %860 = vmatpush1.msra.mxu0 0.0
    %861 = vmatprep.subr.mxu0 0.0
    %862 = vmatpush1.msra.mxu0 0.0
    %863 = vmatprep.subr.mxu0 0.0
    %864 = vmatpush1.msra.mxu0 0.0
    %865 = vmatprep.subr.mxu0 0.0
    %866 = vmatpush1.msra.mxu0 0.0
    %867 = vmatprep.subr.mxu0 0.0
    %868 = vmatpush1.msra.mxu0 0.0
    %869 = vmatprep.subr.mxu0 0.0
    %870 = vmatpush1.msra.mxu0 0.0
    %871 = vmatprep.subr.mxu0 0.0
    %872 = vmatpush1.msra.mxu0 0.0
    %873 = vmatprep.subr.mxu0 0.0
    %874 = vmatpush1.msra.mxu0 0.0
    %875 = vmatprep.subr.mxu0 0.0
    %876 = vmatpush1.msra.mxu0 0.0
    %877 = vmatprep.subr.mxu0 0.0
    %878 = vmatpush1.msra.mxu0 0.0
    %879 = vmatprep.subr.mxu0 0.0
    %880 = vmatpush1.msra.mxu0 0.0
    %881 = vmatprep.subr.mxu0 0.0
    %882 = vmatpush1.msra.mxu0 0.0
    %883 = vmatprep.subr.mxu0 0.0
    %884 = vmatpush1.msra.mxu0 0.0
    %885 = vmatprep.subr.mxu0 0.0
    %886 = vmatpush1.msra.mxu0 0.0
    %887 = vmatprep.subr.mxu0 0.0
    %888 = vmatpush1.msra.mxu0 0.0
    %889 = vmatprep.subr.mxu0 0.0
    %890 = vmatpush1.msra.mxu0 0.0
    %891 = vmatprep.subr.mxu0 0.0
    %892 = vmatpush1.msra.mxu0 0.0
    %893 = vmatprep.subr.mxu0 0.0
    %894 = vmatpush1.msra.mxu0 0.0
    %895 = vmatprep.subr.mxu0 0.0
    %896 = vmatpush1.msra.mxu0 0.0
    %897 = vmatprep.subr.mxu0 0.0
    %898 = vmatpush1.msra.mxu0 0.0
    %899 = vmatprep.subr.mxu0 0.0
    %900 = vmatpush1.msra.mxu0 0.0
    %901 = vmatprep.subr.mxu0 0.0
    %902 = vmatpush1.msra.mxu0 0.0
    %903 = vmatprep.mubr.f32.mxu0 0.0
    %904 = vmatmul.mubr.f32.gmra.mrb[0].mxu0 %v837
    %v905 = vpop.f32.mrb[0].mxu0
    %v906 = vadd.f32 0.0, %v905
    %v907 = vpop.f32.mrb[0].mxu0
    %908 = vdwg.mxu0
    %v910 = vrot.slane %v906, 5
    %v911 = vrot.slane %v906, 6
    %v914 = vadd.f32 %v164, %v910
    %v915 = vadd.f32 %v165, %v911
    %v916 = vxor.u32 %v914, 2147483648
    %v917 = vxor.u32 %v915, 2147483648
    %v918 = vmul.f32 %v916, 1.442695
    %v919 = vpow.pop %v918
    %v920 = vmul.f32 %v917, 1.442695
    %v921 = vpow.pop %v920
    %v922 = vadd.f32 %v919, 1.0
    %v923 = vadd.f32 %v921, 1.0
    %v924 = vrcp.pop %v922
    %v925 = vmul.f32 1.0, %v924
    %v926 = vrcp.pop %v923
    %v927 = vmul.f32 1.0, %v926
    %v928 = vtanh.pop %v914
    %v929 = vtanh.pop %v915
    %v932 = vrot.slane %v696, 7
    %v933 = vrot.slane %v697, 7
    %v936 = vmul.f32 %v925, %v932
    %v937 = vmul.f32 %v927, %v933
    %940 = vrot.lane.b32.xlu0 %v928, 64
    %v941 = vpop.permute.xlu0 %940
    %942 = vrot.lane.b32.xlu0 %v929, 64
    %v943 = vpop.permute.xlu0 %942
    %v946 = vmul.f32 %v925, %v941
    %v947 = vmul.f32 %v927, %v943
    %950 = vrot.lane.b32.xlu0 %v946, 32
    %v951 = vpop.permute.xlu0 %950
    %952 = vrot.lane.b32.xlu0 %v947, 32
    %v953 = vpop.permute.xlu0 %952
    %v956 = vadd.f32 %v936, %v951
    %v957 = vadd.f32 %v937, %v953
    %v958 = vtanh.pop %v956
    %v959 = vtanh.pop %v957
    %962 = vrot.lane.b32.xlu0 %v958, 64
    %v963 = vpop.permute.xlu0 %962
    %964 = vrot.lane.b32.xlu0 %v959, 64
    %v965 = vpop.permute.xlu0 %964
    %v968 = vmul.f32 %v925, %v963
    %v969 = vmul.f32 %v927, %v965
    %v970 = vrot.slane %v709, 7
    %vm971 = vcmask 1043459
    %v972 = vsel %vm971, %v970, %v708
    %973 = vrot.lane.b32.xlu0 %v972, 32
    %v974 = vpop.permute.xlu0 %973
    %v977 = vrot.slane %v819, 6
    %978 = vrot.lane.b32.xlu0 %v977, 64
    %v979 = vpop.permute.xlu0 %978
    %v981 = vsel %vm180, %v974, %v979
    %v983 = vrot.slane %v981, 2
    %v984 = vsel %vm463, %v983, 0
    %986 = vmatprep.subr.mxu0 0.0
    %987 = vmatpush1.msra.mxu0 %v170
    %988 = vmatprep.subr.mxu0 0.0
    %989 = vmatpush1.msra.mxu0 %v171
    %990 = vmatprep.subr.mxu0 0.0
    %991 = vmatpush1.msra.mxu0 %v172
    %992 = vmatprep.subr.mxu0 0.0
    %993 = vmatpush1.msra.mxu0 %v173
    %994 = vmatprep.subr.mxu0 0.0
    %995 = vmatpush1.msra.mxu0 %v174
    %996 = vmatprep.subr.mxu0 0.0
    %997 = vmatpush1.msra.mxu0 %v175
    %998 = vmatprep.subr.mxu0 0.0
    %999 = vmatpush1.msra.mxu0 %v176
    %1000 = vmatprep.subr.mxu0 0.0
    %1001 = vmatpush1.msra.mxu0 %v177
    %1002 = vmatprep.subr.mxu0 0.0
    %1003 = vmatpush1.msra.mxu0 0.0
    %1004 = vmatprep.subr.mxu0 0.0
    %1005 = vmatpush1.msra.mxu0 0.0
    %1006 = vmatprep.subr.mxu0 0.0
    %1007 = vmatpush1.msra.mxu0 0.0
    %1008 = vmatprep.subr.mxu0 0.0
    %1009 = vmatpush1.msra.mxu0 0.0
    %1010 = vmatprep.subr.mxu0 0.0
    %1011 = vmatpush1.msra.mxu0 0.0
    %1012 = vmatprep.subr.mxu0 0.0
    %1013 = vmatpush1.msra.mxu0 0.0
    %1014 = vmatprep.subr.mxu0 0.0
    %1015 = vmatpush1.msra.mxu0 0.0
    %1016 = vmatprep.subr.mxu0 0.0
    %1017 = vmatpush1.msra.mxu0 0.0
    %1018 = vmatprep.subr.mxu0 0.0
    %1019 = vmatpush1.msra.mxu0 0.0
    %1020 = vmatprep.subr.mxu0 0.0
    %1021 = vmatpush1.msra.mxu0 0.0
    %1022 = vmatprep.subr.mxu0 0.0
    %1023 = vmatpush1.msra.mxu0 0.0
    %1024 = vmatprep.subr.mxu0 0.0
    %1025 = vmatpush1.msra.mxu0 0.0
    %1026 = vmatprep.subr.mxu0 0.0
    %1027 = vmatpush1.msra.mxu0 0.0
    %1028 = vmatprep.subr.mxu0 0.0
    %1029 = vmatpush1.msra.mxu0 0.0
    %1030 = vmatprep.subr.mxu0 0.0
    %1031 = vmatpush1.msra.mxu0 0.0
    %1032 = vmatprep.subr.mxu0 0.0
    %1033 = vmatpush1.msra.mxu0 0.0
    %1034 = vmatprep.subr.mxu0 0.0
    %1035 = vmatpush1.msra.mxu0 0.0
    %1036 = vmatprep.subr.mxu0 0.0
    %1037 = vmatpush1.msra.mxu0 0.0
    %1038 = vmatprep.subr.mxu0 0.0
    %1039 = vmatpush1.msra.mxu0 0.0
    %1040 = vmatprep.subr.mxu0 0.0
    %1041 = vmatpush1.msra.mxu0 0.0
    %1042 = vmatprep.subr.mxu0 0.0
    %1043 = vmatpush1.msra.mxu0 0.0
    %1044 = vmatprep.subr.mxu0 0.0
    %1045 = vmatpush1.msra.mxu0 0.0
    %1046 = vmatprep.subr.mxu0 0.0
    %1047 = vmatpush1.msra.mxu0 0.0
    %1048 = vmatprep.subr.mxu0 0.0
    %1049 = vmatpush1.msra.mxu0 0.0
    %1050 = vmatprep.mubr.f32.mxu0 0.0
    %1051 = vmatmul.mubr.f32.gmra.mrb[0].mxu0 %v984
    %v1052 = vpop.f32.mrb[0].mxu0
    %v1053 = vadd.f32 %v461, %v1052
    %v1054 = vpop.f32.mrb[0].mxu0
    %1055 = vdwg.mxu0
    %v1056 = vxor.u32 %v1053, 2147483648
    %v1057 = vmul.f32 %v1056, 1.442695
    %v1058 = vpow.pop %v1057
    %v1059 = vadd.f32 %v1058, 1.0
    %v1060 = vrcp.pop %v1059
    %v1061 = vmul.f32 1.0, %v1060
    %v1062 = vtanh.pop %v1053
    %v1063 = vmul.f32 %v1061, %v813
    %1065 = vrot.lane.b32.xlu0 %v1062, 64
    %v1066 = vpop.permute.xlu0 %1065
    %v1068 = vmul.f32 %v1061, %v1066
    %1070 = vrot.lane.b32.xlu0 %v1068, 32
    %v1071 = vpop.permute.xlu0 %1070
    %v1073 = vadd.f32 %v1063, %v1071
    %v1074 = vtanh.pop %v1073
    %1076 = vrot.lane.b32.xlu0 %v1074, 64
    %v1077 = vpop.permute.xlu0 %1076
    %v1079 = vmul.f32 %v1061, %v1077
    %v1080 = vlaneseq
    %v1081 = vshrl.u32 %v1080, 7
    %v1082 = vsub.s32 2, %v1081
    %v1083 = vrot.slane %v179, %v1082
    %1085 = vrot.lane.b32.xlu0 %v1083, 96
    %v1086 = vpop.permute.xlu0 %1085
    %v1088 = vmul.f32 %v1079, %v1086
    %v1089 = vadd.f32 %v829, %v1088
    %v1092 = vrot.slane %v968, 3
    %v1093 = vrot.slane %v969, 2
    %v1094 = vsel %vm319, %v1093, %v1092
    %1095 = vrot.lane.b32.xlu0 %v1094, 32
    %v1096 = vpop.permute.xlu0 %1095
    %v1097 = vsel %vm180, %v1096, 0
    %1099 = vmatprep.subr.mxu0 0.0
    %1100 = vmatpush1.msra.mxu0 %v166
    %1101 = vmatprep.subr.mxu0 0.0
    %1102 = vmatpush1.msra.mxu0 %v167
    %1103 = vmatprep.subr.mxu0 0.0
    %1104 = vmatpush1.msra.mxu0 %v168
    %1105 = vmatprep.subr.mxu0 0.0
    %1106 = vmatpush1.msra.mxu0 %v169
    %1107 = vmatprep.subr.mxu0 0.0
    %1108 = vmatpush1.msra.mxu0 0.0
    %1109 = vmatprep.subr.mxu0 0.0
    %1110 = vmatpush1.msra.mxu0 0.0
    %1111 = vmatprep.subr.mxu0 0.0
    %1112 = vmatpush1.msra.mxu0 0.0
    %1113 = vmatprep.subr.mxu0 0.0
    %1114 = vmatpush1.msra.mxu0 0.0
    %1115 = vmatprep.subr.mxu0 0.0
    %1116 = vmatpush1.msra.mxu0 0.0
    %1117 = vmatprep.subr.mxu0 0.0
    %1118 = vmatpush1.msra.mxu0 0.0
    %1119 = vmatprep.subr.mxu0 0.0
    %1120 = vmatpush1.msra.mxu0 0.0
    %1121 = vmatprep.subr.mxu0 0.0
    %1122 = vmatpush1.msra.mxu0 0.0
    %1123 = vmatprep.subr.mxu0 0.0
    %1124 = vmatpush1.msra.mxu0 0.0
    %1125 = vmatprep.subr.mxu0 0.0
    %1126 = vmatpush1.msra.mxu0 0.0
    %1127 = vmatprep.subr.mxu0 0.0
    %1128 = vmatpush1.msra.mxu0 0.0
    %1129 = vmatprep.subr.mxu0 0.0
    %1130 = vmatpush1.msra.mxu0 0.0
    %1131 = vmatprep.subr.mxu0 0.0
    %1132 = vmatpush1.msra.mxu0 0.0
    %1133 = vmatprep.subr.mxu0 0.0
    %1134 = vmatpush1.msra.mxu0 0.0
    %1135 = vmatprep.subr.mxu0 0.0
    %1136 = vmatpush1.msra.mxu0 0.0
    %1137 = vmatprep.subr.mxu0 0.0
    %1138 = vmatpush1.msra.mxu0 0.0
    %1139 = vmatprep.subr.mxu0 0.0
    %1140 = vmatpush1.msra.mxu0 0.0
    %1141 = vmatprep.subr.mxu0 0.0
    %1142 = vmatpush1.msra.mxu0 0.0
    %1143 = vmatprep.subr.mxu0 0.0
    %1144 = vmatpush1.msra.mxu0 0.0
    %1145 = vmatprep.subr.mxu0 0.0
    %1146 = vmatpush1.msra.mxu0 0.0
    %1147 = vmatprep.subr.mxu0 0.0
    %1148 = vmatpush1.msra.mxu0 0.0
    %1149 = vmatprep.subr.mxu0 0.0
    %1150 = vmatpush1.msra.mxu0 0.0
    %1151 = vmatprep.subr.mxu0 0.0
    %1152 = vmatpush1.msra.mxu0 0.0
    %1153 = vmatprep.subr.mxu0 0.0
    %1154 = vmatpush1.msra.mxu0 0.0
    %1155 = vmatprep.subr.mxu0 0.0
    %1156 = vmatpush1.msra.mxu0 0.0
    %1157 = vmatprep.subr.mxu0 0.0
    %1158 = vmatpush1.msra.mxu0 0.0
    %1159 = vmatprep.subr.mxu0 0.0
    %1160 = vmatpush1.msra.mxu0 0.0
    %1161 = vmatprep.subr.mxu0 0.0
    %1162 = vmatpush1.msra.mxu0 0.0
    %1163 = vmatprep.mubr.f32.mxu0 0.0
    %1164 = vmatmul.mubr.f32.gmra.mrb[0].mxu0 %v1097
    %v1165 = vpop.f32.mrb[0].mxu0
    %v1166 = vadd.f32 0.0, %v1165
    %v1167 = vpop.f32.mrb[0].mxu0
    %1168 = vdwg.mxu0
    %v1170 = vrot.slane %v1166, 4
    %v1171 = vrot.slane %v1166, 5
    %v1174 = vadd.f32 %v164, %v1170
    %v1175 = vadd.f32 %v165, %v1171
    %v1176 = vxor.u32 %v1174, 2147483648
    %v1177 = vxor.u32 %v1175, 2147483648
    %v1178 = vmul.f32 %v1176, 1.442695
    %v1179 = vpow.pop %v1178
    %v1180 = vmul.f32 %v1177, 1.442695
    %v1181 = vpow.pop %v1180
    %v1182 = vadd.f32 %v1179, 1.0
    %v1183 = vadd.f32 %v1181, 1.0
    %v1184 = vrcp.pop %v1182
    %v1185 = vmul.f32 1.0, %v1184
    %v1186 = vrcp.pop %v1183
    %v1187 = vmul.f32 1.0, %v1186
    %v1188 = vtanh.pop %v1174
    %v1189 = vtanh.pop %v1175
    %v1192 = vrot.slane %v956, 7
    %v1193 = vrot.slane %v957, 7
    %v1196 = vmul.f32 %v1185, %v1192
    %v1197 = vmul.f32 %v1187, %v1193
    %1200 = vrot.lane.b32.xlu0 %v1188, 64
    %v1201 = vpop.permute.xlu0 %1200
    %1202 = vrot.lane.b32.xlu0 %v1189, 64
    %v1203 = vpop.permute.xlu0 %1202
    %v1206 = vmul.f32 %v1185, %v1201
    %v1207 = vmul.f32 %v1187, %v1203
    %1210 = vrot.lane.b32.xlu0 %v1206, 32
    %v1211 = vpop.permute.xlu0 %1210
    %1212 = vrot.lane.b32.xlu0 %v1207, 32
    %v1213 = vpop.permute.xlu0 %1212
    %v1216 = vadd.f32 %v1196, %v1211
    %v1217 = vadd.f32 %v1197, %v1213
    %v1218 = vtanh.pop %v1216
    %v1219 = vtanh.pop %v1217
    %1222 = vrot.lane.b32.xlu0 %v1218, 64
    %v1223 = vpop.permute.xlu0 %1222
    %1224 = vrot.lane.b32.xlu0 %v1219, 64
    %v1225 = vpop.permute.xlu0 %1224
    %v1228 = vmul.f32 %v1185, %v1223
    %v1229 = vmul.f32 %v1187, %v1225
    %v1230 = vrot.slane %v969, 7
    %vm1231 = vcmask 1044484
    %v1232 = vsel %vm1231, %v1230, %v968
    %1233 = vrot.lane.b32.xlu0 %v1232, 32
    %v1234 = vpop.permute.xlu0 %1233
    %v1237 = vrot.slane %v1079, 5
    %1238 = vrot.lane.b32.xlu0 %v1237, 64
    %v1239 = vpop.permute.xlu0 %1238
    %v1241 = vsel %vm180, %v1234, %v1239
    %v1243 = vrot.slane %v1241, 3
    %v1244 = vsel %vm463, %v1243, 0
    %1246 = vmatprep.subr.mxu0 0.0
    %1247 = vmatpush1.msra.mxu0 %v170
    %1248 = vmatprep.subr.mxu0 0.0
    %1249 = vmatpush1.msra.mxu0 %v171
    %1250 = vmatprep.subr.mxu0 0.0
    %1251 = vmatpush1.msra.mxu0 %v172
    %1252 = vmatprep.subr.mxu0 0.0
    %1253 = vmatpush1.msra.mxu0 %v173
    %1254 = vmatprep.subr.mxu0 0.0
    %1255 = vmatpush1.msra.mxu0 %v174
    %1256 = vmatprep.subr.mxu0 0.0
    %1257 = vmatpush1.msra.mxu0 %v175
    %1258 = vmatprep.subr.mxu0 0.0
    %1259 = vmatpush1.msra.mxu0 %v176
    %1260 = vmatprep.subr.mxu0 0.0
    %1261 = vmatpush1.msra.mxu0 %v177
    %1262 = vmatprep.subr.mxu0 0.0
    %1263 = vmatpush1.msra.mxu0 0.0
    %1264 = vmatprep.subr.mxu0 0.0
    %1265 = vmatpush1.msra.mxu0 0.0
    %1266 = vmatprep.subr.mxu0 0.0
    %1267 = vmatpush1.msra.mxu0 0.0
    %1268 = vmatprep.subr.mxu0 0.0
    %1269 = vmatpush1.msra.mxu0 0.0
    %1270 = vmatprep.subr.mxu0 0.0
    %1271 = vmatpush1.msra.mxu0 0.0
    %1272 = vmatprep.subr.mxu0 0.0
    %1273 = vmatpush1.msra.mxu0 0.0
    %1274 = vmatprep.subr.mxu0 0.0
    %1275 = vmatpush1.msra.mxu0 0.0
    %1276 = vmatprep.subr.mxu0 0.0
    %1277 = vmatpush1.msra.mxu0 0.0
    %1278 = vmatprep.subr.mxu0 0.0
    %1279 = vmatpush1.msra.mxu0 0.0
    %1280 = vmatprep.subr.mxu0 0.0
    %1281 = vmatpush1.msra.mxu0 0.0
    %1282 = vmatprep.subr.mxu0 0.0
    %1283 = vmatpush1.msra.mxu0 0.0
    %1284 = vmatprep.subr.mxu0 0.0
    %1285 = vmatpush1.msra.mxu0 0.0
    %1286 = vmatprep.subr.mxu0 0.0
    %1287 = vmatpush1.msra.mxu0 0.0
    %1288 = vmatprep.subr.mxu0 0.0
    %1289 = vmatpush1.msra.mxu0 0.0
    %1290 = vmatprep.subr.mxu0 0.0
    %1291 = vmatpush1.msra.mxu0 0.0
    %1292 = vmatprep.subr.mxu0 0.0
    %1293 = vmatpush1.msra.mxu0 0.0
    %1294 = vmatprep.subr.mxu0 0.0
    %1295 = vmatpush1.msra.mxu0 0.0
    %1296 = vmatprep.subr.mxu0 0.0
    %1297 = vmatpush1.msra.mxu0 0.0
    %1298 = vmatprep.subr.mxu0 0.0
    %1299 = vmatpush1.msra.mxu0 0.0
    %1300 = vmatprep.subr.mxu0 0.0
    %1301 = vmatpush1.msra.mxu0 0.0
    %1302 = vmatprep.subr.mxu0 0.0
    %1303 = vmatpush1.msra.mxu0 0.0
    %1304 = vmatprep.subr.mxu0 0.0
    %1305 = vmatpush1.msra.mxu0 0.0
    %1306 = vmatprep.subr.mxu0 0.0
    %1307 = vmatpush1.msra.mxu0 0.0
    %1308 = vmatprep.subr.mxu0 0.0
    %1309 = vmatpush1.msra.mxu0 0.0
    %1310 = vmatprep.mubr.f32.mxu0 0.0
    %1311 = vmatmul.mubr.f32.gmra.mrb[0].mxu0 %v1244
    %v1312 = vpop.f32.mrb[0].mxu0
    %v1313 = vadd.f32 %v461, %v1312
    %v1314 = vpop.f32.mrb[0].mxu0
    %1315 = vdwg.mxu0
    %v1316 = vxor.u32 %v1313, 2147483648
    %v1317 = vmul.f32 %v1316, 1.442695
    %v1318 = vpow.pop %v1317
    %v1319 = vadd.f32 %v1318, 1.0
    %v1320 = vrcp.pop %v1319
    %v1321 = vmul.f32 1.0, %v1320
    %v1322 = vtanh.pop %v1313
    %v1323 = vmul.f32 %v1321, %v1073
    %1325 = vrot.lane.b32.xlu0 %v1322, 64
    %v1326 = vpop.permute.xlu0 %1325
    %v1328 = vmul.f32 %v1321, %v1326
    %1330 = vrot.lane.b32.xlu0 %v1328, 32
    %v1331 = vpop.permute.xlu0 %1330
    %v1333 = vadd.f32 %v1323, %v1331
    %v1334 = vtanh.pop %v1333
    %1336 = vrot.lane.b32.xlu0 %v1334, 64
    %v1337 = vpop.permute.xlu0 %1336
    %v1339 = vmul.f32 %v1321, %v1337
    %v1340 = vlaneseq
    %v1341 = vshrl.u32 %v1340, 7
    %v1342 = vsub.s32 3, %v1341
    %v1343 = vrot.slane %v179, %v1342
    %1345 = vrot.lane.b32.xlu0 %v1343, 96
    %v1346 = vpop.permute.xlu0 %1345
    %v1348 = vmul.f32 %v1339, %v1346
    %v1349 = vadd.f32 %v1089, %v1348
    %v1352 = vrot.slane %v1228, 4
    %v1353 = vrot.slane %v1229, 3
    %v1354 = vsel %vm319, %v1353, %v1352
    %1355 = vrot.lane.b32.xlu0 %v1354, 32
    %v1356 = vpop.permute.xlu0 %1355
    %v1357 = vsel %vm180, %v1356, 0
    %1359 = vmatprep.subr.mxu0 0.0
    %1360 = vmatpush1.msra.mxu0 %v166
    %1361 = vmatprep.subr.mxu0 0.0
    %1362 = vmatpush1.msra.mxu0 %v167
    %1363 = vmatprep.subr.mxu0 0.0
    %1364 = vmatpush1.msra.mxu0 %v168
    %1365 = vmatprep.subr.mxu0 0.0
    %1366 = vmatpush1.msra.mxu0 %v169
    %1367 = vmatprep.subr.mxu0 0.0
    %1368 = vmatpush1.msra.mxu0 0.0
    %1369 = vmatprep.subr.mxu0 0.0
    %1370 = vmatpush1.msra.mxu0 0.0
    %1371 = vmatprep.subr.mxu0 0.0
    %1372 = vmatpush1.msra.mxu0 0.0
    %1373 = vmatprep.subr.mxu0 0.0
    %1374 = vmatpush1.msra.mxu0 0.0
    %1375 = vmatprep.subr.mxu0 0.0
    %1376 = vmatpush1.msra.mxu0 0.0
    %1377 = vmatprep.subr.mxu0 0.0
    %1378 = vmatpush1.msra.mxu0 0.0
    %1379 = vmatprep.subr.mxu0 0.0
    %1380 = vmatpush1.msra.mxu0 0.0
    %1381 = vmatprep.subr.mxu0 0.0
    %1382 = vmatpush1.msra.mxu0 0.0
    %1383 = vmatprep.subr.mxu0 0.0
    %1384 = vmatpush1.msra.mxu0 0.0
    %1385 = vmatprep.subr.mxu0 0.0
    %1386 = vmatpush1.msra.mxu0 0.0
    %1387 = vmatprep.subr.mxu0 0.0
    %1388 = vmatpush1.msra.mxu0 0.0
    %1389 = vmatprep.subr.mxu0 0.0
    %1390 = vmatpush1.msra.mxu0 0.0
    %1391 = vmatprep.subr.mxu0 0.0
    %1392 = vmatpush1.msra.mxu0 0.0
    %1393 = vmatprep.subr.mxu0 0.0
    %1394 = vmatpush1.msra.mxu0 0.0
    %1395 = vmatprep.subr.mxu0 0.0
    %1396 = vmatpush1.msra.mxu0 0.0
    %1397 = vmatprep.subr.mxu0 0.0
    %1398 = vmatpush1.msra.mxu0 0.0
    %1399 = vmatprep.subr.mxu0 0.0
    %1400 = vmatpush1.msra.mxu0 0.0
    %1401 = vmatprep.subr.mxu0 0.0
    %1402 = vmatpush1.msra.mxu0 0.0
    %1403 = vmatprep.subr.mxu0 0.0
    %1404 = vmatpush1.msra.mxu0 0.0
    %1405 = vmatprep.subr.mxu0 0.0
    %1406 = vmatpush1.msra.mxu0 0.0
    %1407 = vmatprep.subr.mxu0 0.0
    %1408 = vmatpush1.msra.mxu0 0.0
    %1409 = vmatprep.subr.mxu0 0.0
    %1410 = vmatpush1.msra.mxu0 0.0
    %1411 = vmatprep.subr.mxu0 0.0
    %1412 = vmatpush1.msra.mxu0 0.0
    %1413 = vmatprep.subr.mxu0 0.0
    %1414 = vmatpush1.msra.mxu0 0.0
    %1415 = vmatprep.subr.mxu0 0.0
    %1416 = vmatpush1.msra.mxu0 0.0
    %1417 = vmatprep.subr.mxu0 0.0
    %1418 = vmatpush1.msra.mxu0 0.0
    %1419 = vmatprep.subr.mxu0 0.0
    %1420 = vmatpush1.msra.mxu0 0.0
    %1421 = vmatprep.subr.mxu0 0.0
    %1422 = vmatpush1.msra.mxu0 0.0
    %1423 = vmatprep.mubr.f32.mxu0 0.0
    %1424 = vmatmul.mubr.f32.gmra.mrb[0].mxu0 %v1357
    %v1425 = vpop.f32.mrb[0].mxu0
    %v1426 = vadd.f32 0.0, %v1425
    %v1427 = vpop.f32.mrb[0].mxu0
    %1428 = vdwg.mxu0
    %v1430 = vrot.slane %v1426, 3
    %v1431 = vrot.slane %v1426, 4
    %v1434 = vadd.f32 %v164, %v1430
    %v1435 = vadd.f32 %v165, %v1431
    %v1436 = vxor.u32 %v1434, 2147483648
    %v1437 = vxor.u32 %v1435, 2147483648
    %v1438 = vmul.f32 %v1436, 1.442695
    %v1439 = vpow.pop %v1438
    %v1440 = vmul.f32 %v1437, 1.442695
    %v1441 = vpow.pop %v1440
    %v1442 = vadd.f32 %v1439, 1.0
    %v1443 = vadd.f32 %v1441, 1.0
    %v1444 = vrcp.pop %v1442
    %v1445 = vmul.f32 1.0, %v1444
    %v1446 = vrcp.pop %v1443
    %v1447 = vmul.f32 1.0, %v1446
    %v1448 = vtanh.pop %v1434
    %v1449 = vtanh.pop %v1435
    %v1452 = vrot.slane %v1216, 7
    %v1453 = vrot.slane %v1217, 7
    %v1456 = vmul.f32 %v1445, %v1452
    %v1457 = vmul.f32 %v1447, %v1453
    %1460 = vrot.lane.b32.xlu0 %v1448, 64
    %v1461 = vpop.permute.xlu0 %1460
    %1462 = vrot.lane.b32.xlu0 %v1449, 64
    %v1463 = vpop.permute.xlu0 %1462
    %v1466 = vmul.f32 %v1445, %v1461
    %v1467 = vmul.f32 %v1447, %v1463
    %1470 = vrot.lane.b32.xlu0 %v1466, 32
    %v1471 = vpop.permute.xlu0 %1470
    %1472 = vrot.lane.b32.xlu0 %v1467, 32
    %v1473 = vpop.permute.xlu0 %1472
    %v1476 = vadd.f32 %v1456, %v1471
    %v1477 = vadd.f32 %v1457, %v1473
    %v1478 = vtanh.pop %v1476
    %v1479 = vtanh.pop %v1477
    %1482 = vrot.lane.b32.xlu0 %v1478, 64
    %v1483 = vpop.permute.xlu0 %1482
    %1484 = vrot.lane.b32.xlu0 %v1479, 64
    %v1485 = vpop.permute.xlu0 %1484
    %v1488 = vmul.f32 %v1445, %v1483
    %v1489 = vmul.f32 %v1447, %v1485
    %v1490 = vrot.slane %v1229, 7
    %vm1491 = vcmask 1045509
    %v1492 = vsel %vm1491, %v1490, %v1228
    %1493 = vrot.lane.b32.xlu0 %v1492, 32
    %v1494 = vpop.permute.xlu0 %1493
    %v1497 = vrot.slane %v1339, 4
    %1498 = vrot.lane.b32.xlu0 %v1497, 64
    %v1499 = vpop.permute.xlu0 %1498
    %v1501 = vsel %vm180, %v1494, %v1499
    %v1503 = vrot.slane %v1501, 4
    %v1504 = vsel %vm463, %v1503, 0
    %1506 = vmatprep.subr.mxu0 0.0
    %1507 = vmatpush1.msra.mxu0 %v170
    %1508 = vmatprep.subr.mxu0 0.0
    %1509 = vmatpush1.msra.mxu0 %v171
    %1510 = vmatprep.subr.mxu0 0.0
    %1511 = vmatpush1.msra.mxu0 %v172
    %1512 = vmatprep.subr.mxu0 0.0
    %1513 = vmatpush1.msra.mxu0 %v173
    %1514 = vmatprep.subr.mxu0 0.0
    %1515 = vmatpush1.msra.mxu0 %v174
    %1516 = vmatprep.subr.mxu0 0.0
    %1517 = vmatpush1.msra.mxu0 %v175
    %1518 = vmatprep.subr.mxu0 0.0
    %1519 = vmatpush1.msra.mxu0 %v176
    %1520 = vmatprep.subr.mxu0 0.0
    %1521 = vmatpush1.msra.mxu0 %v177
    %1522 = vmatprep.subr.mxu0 0.0
    %1523 = vmatpush1.msra.mxu0 0.0
    %1524 = vmatprep.subr.mxu0 0.0
    %1525 = vmatpush1.msra.mxu0 0.0
    %1526 = vmatprep.subr.mxu0 0.0
    %1527 = vmatpush1.msra.mxu0 0.0
    %1528 = vmatprep.subr.mxu0 0.0
    %1529 = vmatpush1.msra.mxu0 0.0
    %1530 = vmatprep.subr.mxu0 0.0
    %1531 = vmatpush1.msra.mxu0 0.0
    %1532 = vmatprep.subr.mxu0 0.0
    %1533 = vmatpush1.msra.mxu0 0.0
    %1534 = vmatprep.subr.mxu0 0.0
    %1535 = vmatpush1.msra.mxu0 0.0
    %1536 = vmatprep.subr.mxu0 0.0
    %1537 = vmatpush1.msra.mxu0 0.0
    %1538 = vmatprep.subr.mxu0 0.0
    %1539 = vmatpush1.msra.mxu0 0.0
    %1540 = vmatprep.subr.mxu0 0.0
    %1541 = vmatpush1.msra.mxu0 0.0
    %1542 = vmatprep.subr.mxu0 0.0
    %1543 = vmatpush1.msra.mxu0 0.0
    %1544 = vmatprep.subr.mxu0 0.0
    %1545 = vmatpush1.msra.mxu0 0.0
    %1546 = vmatprep.subr.mxu0 0.0
    %1547 = vmatpush1.msra.mxu0 0.0
    %1548 = vmatprep.subr.mxu0 0.0
    %1549 = vmatpush1.msra.mxu0 0.0
    %1550 = vmatprep.subr.mxu0 0.0
    %1551 = vmatpush1.msra.mxu0 0.0
    %1552 = vmatprep.subr.mxu0 0.0
    %1553 = vmatpush1.msra.mxu0 0.0
    %1554 = vmatprep.subr.mxu0 0.0
    %1555 = vmatpush1.msra.mxu0 0.0
    %1556 = vmatprep.subr.mxu0 0.0
    %1557 = vmatpush1.msra.mxu0 0.0
    %1558 = vmatprep.subr.mxu0 0.0
    %1559 = vmatpush1.msra.mxu0 0.0
    %1560 = vmatprep.subr.mxu0 0.0
    %1561 = vmatpush1.msra.mxu0 0.0
    %1562 = vmatprep.subr.mxu0 0.0
    %1563 = vmatpush1.msra.mxu0 0.0
    %1564 = vmatprep.subr.mxu0 0.0
    %1565 = vmatpush1.msra.mxu0 0.0
    %1566 = vmatprep.subr.mxu0 0.0
    %1567 = vmatpush1.msra.mxu0 0.0
    %1568 = vmatprep.subr.mxu0 0.0
    %1569 = vmatpush1.msra.mxu0 0.0
    %1570 = vmatprep.mubr.f32.mxu0 0.0
    %1571 = vmatmul.mubr.f32.gmra.mrb[0].mxu0 %v1504
    %v1572 = vpop.f32.mrb[0].mxu0
    %v1573 = vadd.f32 %v461, %v1572
    %v1574 = vpop.f32.mrb[0].mxu0
    %1575 = vdwg.mxu0
    %v1576 = vxor.u32 %v1573, 2147483648
    %v1577 = vmul.f32 %v1576, 1.442695
    %v1578 = vpow.pop %v1577
    %v1579 = vadd.f32 %v1578, 1.0
    %v1580 = vrcp.pop %v1579
    %v1581 = vmul.f32 1.0, %v1580
    %v1582 = vtanh.pop %v1573
    %v1583 = vmul.f32 %v1581, %v1333
    %1585 = vrot.lane.b32.xlu0 %v1582, 64
    %v1586 = vpop.permute.xlu0 %1585
    %v1588 = vmul.f32 %v1581, %v1586
    %1590 = vrot.lane.b32.xlu0 %v1588, 32
    %v1591 = vpop.permute.xlu0 %1590
    %v1593 = vadd.f32 %v1583, %v1591
    %v1594 = vtanh.pop %v1593
    %1596 = vrot.lane.b32.xlu0 %v1594, 64
    %v1597 = vpop.permute.xlu0 %1596
    %v1599 = vmul.f32 %v1581, %v1597
    %v1600 = vlaneseq
    %v1601 = vshrl.u32 %v1600, 7
    %v1602 = vsub.s32 4, %v1601
    %v1603 = vrot.slane %v179, %v1602
    %1605 = vrot.lane.b32.xlu0 %v1603, 96
    %v1606 = vpop.permute.xlu0 %1605
    %v1608 = vmul.f32 %v1599, %v1606
    %v1609 = vadd.f32 %v1349, %v1608
    %v1612 = vrot.slane %v1488, 5
    %v1613 = vrot.slane %v1489, 4
    %v1614 = vsel %vm319, %v1613, %v1612
    %1615 = vrot.lane.b32.xlu0 %v1614, 32
    %v1616 = vpop.permute.xlu0 %1615
    %v1617 = vsel %vm180, %v1616, 0
    %1619 = vmatprep.subr.mxu0 0.0
    %1620 = vmatpush1.msra.mxu0 %v166
    %1621 = vmatprep.subr.mxu0 0.0
    %1622 = vmatpush1.msra.mxu0 %v167
    %1623 = vmatprep.subr.mxu0 0.0
    %1624 = vmatpush1.msra.mxu0 %v168
    %1625 = vmatprep.subr.mxu0 0.0
    %1626 = vmatpush1.msra.mxu0 %v169
    %1627 = vmatprep.subr.mxu0 0.0
    %1628 = vmatpush1.msra.mxu0 0.0
    %1629 = vmatprep.subr.mxu0 0.0
    %1630 = vmatpush1.msra.mxu0 0.0
    %1631 = vmatprep.subr.mxu0 0.0
    %1632 = vmatpush1.msra.mxu0 0.0
    %1633 = vmatprep.subr.mxu0 0.0
    %1634 = vmatpush1.msra.mxu0 0.0
    %1635 = vmatprep.subr.mxu0 0.0
    %1636 = vmatpush1.msra.mxu0 0.0
    %1637 = vmatprep.subr.mxu0 0.0
    %1638 = vmatpush1.msra.mxu0 0.0
    %1639 = vmatprep.subr.mxu0 0.0
    %1640 = vmatpush1.msra.mxu0 0.0
    %1641 = vmatprep.subr.mxu0 0.0
    %1642 = vmatpush1.msra.mxu0 0.0
    %1643 = vmatprep.subr.mxu0 0.0
    %1644 = vmatpush1.msra.mxu0 0.0
    %1645 = vmatprep.subr.mxu0 0.0
    %1646 = vmatpush1.msra.mxu0 0.0
    %1647 = vmatprep.subr.mxu0 0.0
    %1648 = vmatpush1.msra.mxu0 0.0
    %1649 = vmatprep.subr.mxu0 0.0
    %1650 = vmatpush1.msra.mxu0 0.0
    %1651 = vmatprep.subr.mxu0 0.0
    %1652 = vmatpush1.msra.mxu0 0.0
    %1653 = vmatprep.subr.mxu0 0.0
    %1654 = vmatpush1.msra.mxu0 0.0
    %1655 = vmatprep.subr.mxu0 0.0
    %1656 = vmatpush1.msra.mxu0 0.0
    %1657 = vmatprep.subr.mxu0 0.0
    %1658 = vmatpush1.msra.mxu0 0.0
    %1659 = vmatprep.subr.mxu0 0.0
    %1660 = vmatpush1.msra.mxu0 0.0
    %1661 = vmatprep.subr.mxu0 0.0
    %1662 = vmatpush1.msra.mxu0 0.0
    %1663 = vmatprep.subr.mxu0 0.0
    %1664 = vmatpush1.msra.mxu0 0.0
    %1665 = vmatprep.subr.mxu0 0.0
    %1666 = vmatpush1.msra.mxu0 0.0
    %1667 = vmatprep.subr.mxu0 0.0
    %1668 = vmatpush1.msra.mxu0 0.0
    %1669 = vmatprep.subr.mxu0 0.0
    %1670 = vmatpush1.msra.mxu0 0.0
    %1671 = vmatprep.subr.mxu0 0.0
    %1672 = vmatpush1.msra.mxu0 0.0
    %1673 = vmatprep.subr.mxu0 0.0
    %1674 = vmatpush1.msra.mxu0 0.0
    %1675 = vmatprep.subr.mxu0 0.0
    %1676 = vmatpush1.msra.mxu0 0.0
    %1677 = vmatprep.subr.mxu0 0.0
    %1678 = vmatpush1.msra.mxu0 0.0
    %1679 = vmatprep.subr.mxu0 0.0
    %1680 = vmatpush1.msra.mxu0 0.0
    %1681 = vmatprep.subr.mxu0 0.0
    %1682 = vmatpush1.msra.mxu0 0.0
    %1683 = vmatprep.mubr.f32.mxu0 0.0
    %1684 = vmatmul.mubr.f32.gmra.mrb[0].mxu0 %v1617
    %v1685 = vpop.f32.mrb[0].mxu0
    %v1686 = vadd.f32 0.0, %v1685
    %v1687 = vpop.f32.mrb[0].mxu0
    %1688 = vdwg.mxu0
    %v1690 = vrot.slane %v1686, 2
    %v1691 = vrot.slane %v1686, 3
    %v1694 = vadd.f32 %v164, %v1690
    %v1695 = vadd.f32 %v165, %v1691
    %v1696 = vxor.u32 %v1694, 2147483648
    %v1697 = vxor.u32 %v1695, 2147483648
    %v1698 = vmul.f32 %v1696, 1.442695
    %v1699 = vpow.pop %v1698
    %v1700 = vmul.f32 %v1697, 1.442695
    %v1701 = vpow.pop %v1700
    %v1702 = vadd.f32 %v1699, 1.0
    %v1703 = vadd.f32 %v1701, 1.0
    %v1704 = vrcp.pop %v1702
    %v1705 = vmul.f32 1.0, %v1704
    %v1706 = vrcp.pop %v1703
    %v1707 = vmul.f32 1.0, %v1706
    %v1708 = vtanh.pop %v1694
    %v1709 = vtanh.pop %v1695
    %v1712 = vrot.slane %v1476, 7
    %v1713 = vrot.slane %v1477, 7
    %v1716 = vmul.f32 %v1705, %v1712
    %v1717 = vmul.f32 %v1707, %v1713
    %1720 = vrot.lane.b32.xlu0 %v1708, 64
    %v1721 = vpop.permute.xlu0 %1720
    %1722 = vrot.lane.b32.xlu0 %v1709, 64
    %v1723 = vpop.permute.xlu0 %1722
    %v1726 = vmul.f32 %v1705, %v1721
    %v1727 = vmul.f32 %v1707, %v1723
    %1730 = vrot.lane.b32.xlu0 %v1726, 32
    %v1731 = vpop.permute.xlu0 %1730
    %1732 = vrot.lane.b32.xlu0 %v1727, 32
    %v1733 = vpop.permute.xlu0 %1732
    %v1736 = vadd.f32 %v1716, %v1731
    %v1737 = vadd.f32 %v1717, %v1733
    %v1738 = vtanh.pop %v1736
    %v1739 = vtanh.pop %v1737
    %1742 = vrot.lane.b32.xlu0 %v1738, 64
    %v1743 = vpop.permute.xlu0 %1742
    %1744 = vrot.lane.b32.xlu0 %v1739, 64
    %v1745 = vpop.permute.xlu0 %1744
    %v1748 = vmul.f32 %v1705, %v1743
    %v1749 = vmul.f32 %v1707, %v1745
    %v1750 = vrot.slane %v1489, 7
    %vm1751 = vcmask 1046534
    %v1752 = vsel %vm1751, %v1750, %v1488
    %1753 = vrot.lane.b32.xlu0 %v1752, 32
    %v1754 = vpop.permute.xlu0 %1753
    %v1757 = vrot.slane %v1599, 3
    %1758 = vrot.lane.b32.xlu0 %v1757, 64
    %v1759 = vpop.permute.xlu0 %1758
    %v1761 = vsel %vm180, %v1754, %v1759
    %v1763 = vrot.slane %v1761, 5
    %v1764 = vsel %vm463, %v1763, 0
    %1766 = vmatprep.subr.mxu0 0.0
    %1767 = vmatpush1.msra.mxu0 %v170
    %1768 = vmatprep.subr.mxu0 0.0
    %1769 = vmatpush1.msra.mxu0 %v171
    %1770 = vmatprep.subr.mxu0 0.0
    %1771 = vmatpush1.msra.mxu0 %v172
    %1772 = vmatprep.subr.mxu0 0.0
    %1773 = vmatpush1.msra.mxu0 %v173
    %1774 = vmatprep.subr.mxu0 0.0
    %1775 = vmatpush1.msra.mxu0 %v174
    %1776 = vmatprep.subr.mxu0 0.0
    %1777 = vmatpush1.msra.mxu0 %v175
    %1778 = vmatprep.subr.mxu0 0.0
    %1779 = vmatpush1.msra.mxu0 %v176
    %1780 = vmatprep.subr.mxu0 0.0
    %1781 = vmatpush1.msra.mxu0 %v177
    %1782 = vmatprep.subr.mxu0 0.0
    %1783 = vmatpush1.msra.mxu0 0.0
    %1784 = vmatprep.subr.mxu0 0.0
    %1785 = vmatpush1.msra.mxu0 0.0
    %1786 = vmatprep.subr.mxu0 0.0
    %1787 = vmatpush1.msra.mxu0 0.0
    %1788 = vmatprep.subr.mxu0 0.0
    %1789 = vmatpush1.msra.mxu0 0.0
    %1790 = vmatprep.subr.mxu0 0.0
    %1791 = vmatpush1.msra.mxu0 0.0
    %1792 = vmatprep.subr.mxu0 0.0
    %1793 = vmatpush1.msra.mxu0 0.0
    %1794 = vmatprep.subr.mxu0 0.0
    %1795 = vmatpush1.msra.mxu0 0.0
    %1796 = vmatprep.subr.mxu0 0.0
    %1797 = vmatpush1.msra.mxu0 0.0
    %1798 = vmatprep.subr.mxu0 0.0
    %1799 = vmatpush1.msra.mxu0 0.0
    %1800 = vmatprep.subr.mxu0 0.0
    %1801 = vmatpush1.msra.mxu0 0.0
    %1802 = vmatprep.subr.mxu0 0.0
    %1803 = vmatpush1.msra.mxu0 0.0
    %1804 = vmatprep.subr.mxu0 0.0
    %1805 = vmatpush1.msra.mxu0 0.0
    %1806 = vmatprep.subr.mxu0 0.0
    %1807 = vmatpush1.msra.mxu0 0.0
    %1808 = vmatprep.subr.mxu0 0.0
    %1809 = vmatpush1.msra.mxu0 0.0
    %1810 = vmatprep.subr.mxu0 0.0
    %1811 = vmatpush1.msra.mxu0 0.0
    %1812 = vmatprep.subr.mxu0 0.0
    %1813 = vmatpush1.msra.mxu0 0.0
    %1814 = vmatprep.subr.mxu0 0.0
    %1815 = vmatpush1.msra.mxu0 0.0
    %1816 = vmatprep.subr.mxu0 0.0
    %1817 = vmatpush1.msra.mxu0 0.0
    %1818 = vmatprep.subr.mxu0 0.0
    %1819 = vmatpush1.msra.mxu0 0.0
    %1820 = vmatprep.subr.mxu0 0.0
    %1821 = vmatpush1.msra.mxu0 0.0
    %1822 = vmatprep.subr.mxu0 0.0
    %1823 = vmatpush1.msra.mxu0 0.0
    %1824 = vmatprep.subr.mxu0 0.0
    %1825 = vmatpush1.msra.mxu0 0.0
    %1826 = vmatprep.subr.mxu0 0.0
    %1827 = vmatpush1.msra.mxu0 0.0
    %1828 = vmatprep.subr.mxu0 0.0
    %1829 = vmatpush1.msra.mxu0 0.0
    %1830 = vmatprep.mubr.f32.mxu0 0.0
    %1831 = vmatmul.mubr.f32.gmra.mrb[0].mxu0 %v1764
    %v1832 = vpop.f32.mrb[0].mxu0
    %v1833 = vadd.f32 %v461, %v1832
    %v1834 = vpop.f32.mrb[0].mxu0
    %1835 = vdwg.mxu0
    %v1836 = vxor.u32 %v1833, 2147483648
    %v1837 = vmul.f32 %v1836, 1.442695
    %v1838 = vpow.pop %v1837
    %v1839 = vadd.f32 %v1838, 1.0
    %v1840 = vrcp.pop %v1839
    %v1841 = vmul.f32 1.0, %v1840
    %v1842 = vtanh.pop %v1833
    %v1843 = vmul.f32 %v1841, %v1593
    %1845 = vrot.lane.b32.xlu0 %v1842, 64
    %v1846 = vpop.permute.xlu0 %1845
    %v1848 = vmul.f32 %v1841, %v1846
    %1850 = vrot.lane.b32.xlu0 %v1848, 32
    %v1851 = vpop.permute.xlu0 %1850
    %v1853 = vadd.f32 %v1843, %v1851
    %v1854 = vtanh.pop %v1853
    %1856 = vrot.lane.b32.xlu0 %v1854, 64
    %v1857 = vpop.permute.xlu0 %1856
    %v1859 = vmul.f32 %v1841, %v1857
    %v1860 = vlaneseq
    %v1861 = vshrl.u32 %v1860, 7
    %v1862 = vsub.s32 5, %v1861
    %v1863 = vrot.slane %v179, %v1862
    %1865 = vrot.lane.b32.xlu0 %v1863, 96
    %v1866 = vpop.permute.xlu0 %1865
    %v1868 = vmul.f32 %v1859, %v1866
    %v1869 = vadd.f32 %v1609, %v1868
    %v1872 = vrot.slane %v1748, 6
    %v1873 = vrot.slane %v1749, 5
    %v1874 = vsel %vm319, %v1873, %v1872
    %1875 = vrot.lane.b32.xlu0 %v1874, 32
    %v1876 = vpop.permute.xlu0 %1875
    %v1877 = vsel %vm180, %v1876, 0
    %1879 = vmatprep.subr.mxu0 0.0
    %1880 = vmatpush1.msra.mxu0 %v166
    %1881 = vmatprep.subr.mxu0 0.0
    %1882 = vmatpush1.msra.mxu0 %v167
    %1883 = vmatprep.subr.mxu0 0.0
    %1884 = vmatpush1.msra.mxu0 %v168
    %1885 = vmatprep.subr.mxu0 0.0
    %1886 = vmatpush1.msra.mxu0 %v169
    %1887 = vmatprep.subr.mxu0 0.0
    %1888 = vmatpush1.msra.mxu0 0.0
    %1889 = vmatprep.subr.mxu0 0.0
    %1890 = vmatpush1.msra.mxu0 0.0
    %1891 = vmatprep.subr.mxu0 0.0
    %1892 = vmatpush1.msra.mxu0 0.0
    %1893 = vmatprep.subr.mxu0 0.0
    %1894 = vmatpush1.msra.mxu0 0.0
    %1895 = vmatprep.subr.mxu0 0.0
    %1896 = vmatpush1.msra.mxu0 0.0
    %1897 = vmatprep.subr.mxu0 0.0
    %1898 = vmatpush1.msra.mxu0 0.0
    %1899 = vmatprep.subr.mxu0 0.0
    %1900 = vmatpush1.msra.mxu0 0.0
    %1901 = vmatprep.subr.mxu0 0.0
    %1902 = vmatpush1.msra.mxu0 0.0
    %1903 = vmatprep.subr.mxu0 0.0
    %1904 = vmatpush1.msra.mxu0 0.0
    %1905 = vmatprep.subr.mxu0 0.0
    %1906 = vmatpush1.msra.mxu0 0.0
    %1907 = vmatprep.subr.mxu0 0.0
    %1908 = vmatpush1.msra.mxu0 0.0
    %1909 = vmatprep.subr.mxu0 0.0
    %1910 = vmatpush1.msra.mxu0 0.0
    %1911 = vmatprep.subr.mxu0 0.0
    %1912 = vmatpush1.msra.mxu0 0.0
    %1913 = vmatprep.subr.mxu0 0.0
    %1914 = vmatpush1.msra.mxu0 0.0
    %1915 = vmatprep.subr.mxu0 0.0
    %1916 = vmatpush1.msra.mxu0 0.0
    %1917 = vmatprep.subr.mxu0 0.0
    %1918 = vmatpush1.msra.mxu0 0.0
    %1919 = vmatprep.subr.mxu0 0.0
    %1920 = vmatpush1.msra.mxu0 0.0
    %1921 = vmatprep.subr.mxu0 0.0
    %1922 = vmatpush1.msra.mxu0 0.0
    %1923 = vmatprep.subr.mxu0 0.0
    %1924 = vmatpush1.msra.mxu0 0.0
    %1925 = vmatprep.subr.mxu0 0.0
    %1926 = vmatpush1.msra.mxu0 0.0
    %1927 = vmatprep.subr.mxu0 0.0
    %1928 = vmatpush1.msra.mxu0 0.0
    %1929 = vmatprep.subr.mxu0 0.0
    %1930 = vmatpush1.msra.mxu0 0.0
    %1931 = vmatprep.subr.mxu0 0.0
    %1932 = vmatpush1.msra.mxu0 0.0
    %1933 = vmatprep.subr.mxu0 0.0
    %1934 = vmatpush1.msra.mxu0 0.0
    %1935 = vmatprep.subr.mxu0 0.0
    %1936 = vmatpush1.msra.mxu0 0.0
    %1937 = vmatprep.subr.mxu0 0.0
    %1938 = vmatpush1.msra.mxu0 0.0
    %1939 = vmatprep.subr.mxu0 0.0
    %1940 = vmatpush1.msra.mxu0 0.0
    %1941 = vmatprep.subr.mxu0 0.0
    %1942 = vmatpush1.msra.mxu0 0.0
    %1943 = vmatprep.mubr.f32.mxu0 0.0
    %1944 = vmatmul.mubr.f32.gmra.mrb[0].mxu0 %v1877
    %v1945 = vpop.f32.mrb[0].mxu0
    %v1946 = vadd.f32 0.0, %v1945
    %v1947 = vpop.f32.mrb[0].mxu0
    %1948 = vdwg.mxu0
    %v1950 = vrot.slane %v1946, 1
    %v1951 = vrot.slane %v1946, 2
    %v1954 = vadd.f32 %v164, %v1950
    %v1955 = vadd.f32 %v165, %v1951
    %v1956 = vxor.u32 %v1954, 2147483648
    %v1957 = vxor.u32 %v1955, 2147483648
    %v1958 = vmul.f32 %v1956, 1.442695
    %v1959 = vpow.pop %v1958
    %v1960 = vmul.f32 %v1957, 1.442695
    %v1961 = vpow.pop %v1960
    %v1962 = vadd.f32 %v1959, 1.0
    %v1963 = vadd.f32 %v1961, 1.0
    %v1964 = vrcp.pop %v1962
    %v1965 = vmul.f32 1.0, %v1964
    %v1966 = vrcp.pop %v1963
    %v1967 = vmul.f32 1.0, %v1966
    %v1968 = vtanh.pop %v1954
    %v1969 = vtanh.pop %v1955
    %v1972 = vrot.slane %v1736, 7
    %v1973 = vrot.slane %v1737, 7
    %v1976 = vmul.f32 %v1965, %v1972
    %v1977 = vmul.f32 %v1967, %v1973
    %1980 = vrot.lane.b32.xlu0 %v1968, 64
    %v1981 = vpop.permute.xlu0 %1980
    %1982 = vrot.lane.b32.xlu0 %v1969, 64
    %v1983 = vpop.permute.xlu0 %1982
    %v1986 = vmul.f32 %v1965, %v1981
    %v1987 = vmul.f32 %v1967, %v1983
    %1990 = vrot.lane.b32.xlu0 %v1986, 32
    %v1991 = vpop.permute.xlu0 %1990
    %1992 = vrot.lane.b32.xlu0 %v1987, 32
    %v1993 = vpop.permute.xlu0 %1992
    %v1996 = vadd.f32 %v1976, %v1991
    %v1997 = vadd.f32 %v1977, %v1993
    %v1998 = vtanh.pop %v1996
    %v1999 = vtanh.pop %v1997
    %2002 = vrot.lane.b32.xlu0 %v1998, 64
    %v2003 = vpop.permute.xlu0 %2002
    %2004 = vrot.lane.b32.xlu0 %v1999, 64
    %v2005 = vpop.permute.xlu0 %2004
    %v2008 = vmul.f32 %v1965, %v2003
    %v2009 = vmul.f32 %v1967, %v2005
    %v2010 = vrot.slane %v1749, 7
    %vm2011 = vcmask 1047559
    %v2012 = vsel %vm2011, %v2010, %v1748
    %2013 = vrot.lane.b32.xlu0 %v2012, 32
    %v2014 = vpop.permute.xlu0 %2013
    %v2017 = vrot.slane %v1859, 2
    %2018 = vrot.lane.b32.xlu0 %v2017, 64
    %v2019 = vpop.permute.xlu0 %2018
    %v2021 = vsel %vm180, %v2014, %v2019
    %v2023 = vrot.slane %v2021, 6
    %v2024 = vsel %vm463, %v2023, 0
    %2026 = vmatprep.subr.mxu0 0.0
    %2027 = vmatpush1.msra.mxu0 %v170
    %2028 = vmatprep.subr.mxu0 0.0
    %2029 = vmatpush1.msra.mxu0 %v171
    %2030 = vmatprep.subr.mxu0 0.0
    %2031 = vmatpush1.msra.mxu0 %v172
    %2032 = vmatprep.subr.mxu0 0.0
    %2033 = vmatpush1.msra.mxu0 %v173
    %2034 = vmatprep.subr.mxu0 0.0
    %2035 = vmatpush1.msra.mxu0 %v174
    %2036 = vmatprep.subr.mxu0 0.0
    %2037 = vmatpush1.msra.mxu0 %v175
    %2038 = vmatprep.subr.mxu0 0.0
    %2039 = vmatpush1.msra.mxu0 %v176
    %2040 = vmatprep.subr.mxu0 0.0
    %2041 = vmatpush1.msra.mxu0 %v177
    %2042 = vmatprep.subr.mxu0 0.0
    %2043 = vmatpush1.msra.mxu0 0.0
    %2044 = vmatprep.subr.mxu0 0.0
    %2045 = vmatpush1.msra.mxu0 0.0
    %2046 = vmatprep.subr.mxu0 0.0
    %2047 = vmatpush1.msra.mxu0 0.0
    %2048 = vmatprep.subr.mxu0 0.0
    %2049 = vmatpush1.msra.mxu0 0.0
    %2050 = vmatprep.subr.mxu0 0.0
    %2051 = vmatpush1.msra.mxu0 0.0
    %2052 = vmatprep.subr.mxu0 0.0
    %2053 = vmatpush1.msra.mxu0 0.0
    %2054 = vmatprep.subr.mxu0 0.0
    %2055 = vmatpush1.msra.mxu0 0.0
    %2056 = vmatprep.subr.mxu0 0.0
    %2057 = vmatpush1.msra.mxu0 0.0
    %2058 = vmatprep.subr.mxu0 0.0
    %2059 = vmatpush1.msra.mxu0 0.0
    %2060 = vmatprep.subr.mxu0 0.0
    %2061 = vmatpush1.msra.mxu0 0.0
    %2062 = vmatprep.subr.mxu0 0.0
    %2063 = vmatpush1.msra.mxu0 0.0
    %2064 = vmatprep.subr.mxu0 0.0
    %2065 = vmatpush1.msra.mxu0 0.0
    %2066 = vmatprep.subr.mxu0 0.0
    %2067 = vmatpush1.msra.mxu0 0.0
    %2068 = vmatprep.subr.mxu0 0.0
    %2069 = vmatpush1.msra.mxu0 0.0
    %2070 = vmatprep.subr.mxu0 0.0
    %2071 = vmatpush1.msra.mxu0 0.0
    %2072 = vmatprep.subr.mxu0 0.0
    %2073 = vmatpush1.msra.mxu0 0.0
    %2074 = vmatprep.subr.mxu0 0.0
    %2075 = vmatpush1.msra.mxu0 0.0
    %2076 = vmatprep.subr.mxu0 0.0
    %2077 = vmatpush1.msra.mxu0 0.0
    %2078 = vmatprep.subr.mxu0 0.0
    %2079 = vmatpush1.msra.mxu0 0.0
    %2080 = vmatprep.subr.mxu0 0.0
    %2081 = vmatpush1.msra.mxu0 0.0
    %2082 = vmatprep.subr.mxu0 0.0
    %2083 = vmatpush1.msra.mxu0 0.0
    %2084 = vmatprep.subr.mxu0 0.0
    %2085 = vmatpush1.msra.mxu0 0.0
    %2086 = vmatprep.subr.mxu0 0.0
    %2087 = vmatpush1.msra.mxu0 0.0
    %2088 = vmatprep.subr.mxu0 0.0
    %2089 = vmatpush1.msra.mxu0 0.0
    %2090 = vmatprep.mubr.f32.mxu0 0.0
    %2091 = vmatmul.mubr.f32.gmra.mrb[0].mxu0 %v2024
    %v2092 = vpop.f32.mrb[0].mxu0
    %v2093 = vadd.f32 %v461, %v2092
    %v2094 = vpop.f32.mrb[0].mxu0
    %2095 = vdwg.mxu0
    %v2096 = vxor.u32 %v2093, 2147483648
    %v2097 = vmul.f32 %v2096, 1.442695
    %v2098 = vpow.pop %v2097
    %v2099 = vadd.f32 %v2098, 1.0
    %v2100 = vrcp.pop %v2099
    %v2101 = vmul.f32 1.0, %v2100
    %v2102 = vtanh.pop %v2093
    %v2103 = vmul.f32 %v2101, %v1853
    %2105 = vrot.lane.b32.xlu0 %v2102, 64
    %v2106 = vpop.permute.xlu0 %2105
    %v2108 = vmul.f32 %v2101, %v2106
    %2110 = vrot.lane.b32.xlu0 %v2108, 32
    %v2111 = vpop.permute.xlu0 %2110
    %v2113 = vadd.f32 %v2103, %v2111
    %v2114 = vtanh.pop %v2113
    %2116 = vrot.lane.b32.xlu0 %v2114, 64
    %v2117 = vpop.permute.xlu0 %2116
    %v2119 = vmul.f32 %v2101, %v2117
    %v2120 = vlaneseq
    %v2121 = vshrl.u32 %v2120, 7
    %v2122 = vsub.s32 6, %v2121
    %v2123 = vrot.slane %v179, %v2122
    %2125 = vrot.lane.b32.xlu0 %v2123, 96
    %v2126 = vpop.permute.xlu0 %2125
    %v2128 = vmul.f32 %v2119, %v2126
    %v2129 = vadd.f32 %v1869, %v2128
    %v2132 = vrot.slane %v2009, 7
    %2133 = vrot.lane.b32.xlu0 %v2008, 32
    %v2134 = vpop.permute.xlu0 %2133
    %2135 = vrot.lane.b32.xlu0 %v2132, 32
    %v2136 = vpop.permute.xlu0 %2135
    %v2140 = vrot.slane %v2119, 1
    %2141 = vrot.lane.b32.xlu0 %v2140, 64
    %v2142 = vpop.permute.xlu0 %2141
    %v2144 = vsel %vm180, %v2134, %v2142
    %v2145 = vsel %vm180, %v2136, %v2142
    %vm2148 = vcmask 1040384
    %v2149 = vrot.slane %v2144, 7
    %v2150 = vrot.slane %v2145, 7
    %v2151 = vsel %vm2148, %v2149, %v2150
    %v2152 = vsel %vm463, %v2151, 0
    %2154 = vmatprep.subr.mxu0 0.0
    %2155 = vmatpush1.msra.mxu0 %v170
    %2156 = vmatprep.subr.mxu0 0.0
    %2157 = vmatpush1.msra.mxu0 %v171
    %2158 = vmatprep.subr.mxu0 0.0
    %2159 = vmatpush1.msra.mxu0 %v172
    %2160 = vmatprep.subr.mxu0 0.0
    %2161 = vmatpush1.msra.mxu0 %v173
    %2162 = vmatprep.subr.mxu0 0.0
    %2163 = vmatpush1.msra.mxu0 %v174
    %2164 = vmatprep.subr.mxu0 0.0
    %2165 = vmatpush1.msra.mxu0 %v175
    %2166 = vmatprep.subr.mxu0 0.0
    %2167 = vmatpush1.msra.mxu0 %v176
    %2168 = vmatprep.subr.mxu0 0.0
    %2169 = vmatpush1.msra.mxu0 %v177
    %2170 = vmatprep.subr.mxu0 0.0
    %2171 = vmatpush1.msra.mxu0 0.0
    %2172 = vmatprep.subr.mxu0 0.0
    %2173 = vmatpush1.msra.mxu0 0.0
    %2174 = vmatprep.subr.mxu0 0.0
    %2175 = vmatpush1.msra.mxu0 0.0
    %2176 = vmatprep.subr.mxu0 0.0
    %2177 = vmatpush1.msra.mxu0 0.0
    %2178 = vmatprep.subr.mxu0 0.0
    %2179 = vmatpush1.msra.mxu0 0.0
    %2180 = vmatprep.subr.mxu0 0.0
    %2181 = vmatpush1.msra.mxu0 0.0
    %2182 = vmatprep.subr.mxu0 0.0
    %2183 = vmatpush1.msra.mxu0 0.0
    %2184 = vmatprep.subr.mxu0 0.0
    %2185 = vmatpush1.msra.mxu0 0.0
    %2186 = vmatprep.subr.mxu0 0.0
    %2187 = vmatpush1.msra.mxu0 0.0
    %2188 = vmatprep.subr.mxu0 0.0
    %2189 = vmatpush1.msra.mxu0 0.0
    %2190 = vmatprep.subr.mxu0 0.0
    %2191 = vmatpush1.msra.mxu0 0.0
    %2192 = vmatprep.subr.mxu0 0.0
    %2193 = vmatpush1.msra.mxu0 0.0
    %2194 = vmatprep.subr.mxu0 0.0
    %2195 = vmatpush1.msra.mxu0 0.0
    %2196 = vmatprep.subr.mxu0 0.0
    %2197 = vmatpush1.msra.mxu0 0.0
    %2198 = vmatprep.subr.mxu0 0.0
    %2199 = vmatpush1.msra.mxu0 0.0
    %2200 = vmatprep.subr.mxu0 0.0
    %2201 = vmatpush1.msra.mxu0 0.0
    %2202 = vmatprep.subr.mxu0 0.0
    %2203 = vmatpush1.msra.mxu0 0.0
    %2204 = vmatprep.subr.mxu0 0.0
    %2205 = vmatpush1.msra.mxu0 0.0
    %2206 = vmatprep.subr.mxu0 0.0
    %2207 = vmatpush1.msra.mxu0 0.0
    %2208 = vmatprep.subr.mxu0 0.0
    %2209 = vmatpush1.msra.mxu0 0.0
    %2210 = vmatprep.subr.mxu0 0.0
    %2211 = vmatpush1.msra.mxu0 0.0
    %2212 = vmatprep.subr.mxu0 0.0
    %2213 = vmatpush1.msra.mxu0 0.0
    %2214 = vmatprep.subr.mxu0 0.0
    %2215 = vmatpush1.msra.mxu0 0.0
    %2216 = vmatprep.subr.mxu0 0.0
    %2217 = vmatpush1.msra.mxu0 0.0
    %2218 = vmatprep.mubr.f32.mxu0 0.0
    %2219 = vmatmul.mubr.f32.gmra.mrb[0].mxu0 %v2152
    %v2220 = vpop.f32.mrb[0].mxu0
    %v2221 = vadd.f32 %v461, %v2220
    %v2222 = vpop.f32.mrb[0].mxu0
    %2223 = vdwg.mxu0
    %v2224 = vxor.u32 %v2221, 2147483648
    %v2225 = vmul.f32 %v2224, 1.442695
    %v2226 = vpow.pop %v2225
    %v2227 = vadd.f32 %v2226, 1.0
    %v2228 = vrcp.pop %v2227
    %v2229 = vmul.f32 1.0, %v2228
    %v2230 = vtanh.pop %v2221
    %v2231 = vmul.f32 %v2229, %v2113
    %2233 = vrot.lane.b32.xlu0 %v2230, 64
    %v2234 = vpop.permute.xlu0 %2233
    %v2236 = vmul.f32 %v2229, %v2234
    %2238 = vrot.lane.b32.xlu0 %v2236, 32
    %v2239 = vpop.permute.xlu0 %2238
    %v2241 = vadd.f32 %v2231, %v2239
    %v2242 = vtanh.pop %v2241
    %2244 = vrot.lane.b32.xlu0 %v2242, 64
    %v2245 = vpop.permute.xlu0 %2244
    %v2247 = vmul.f32 %v2229, %v2245
    %v2248 = vlaneseq
    %v2249 = vshrl.u32 %v2248, 7
    %v2250 = vsub.s32 7, %v2249
    %v2251 = vrot.slane %v179, %v2250
    %2253 = vrot.lane.b32.xlu0 %v2251, 96
    %v2254 = vpop.permute.xlu0 %2253
    %v2256 = vmul.f32 %v2247, %v2254
    %v2257 = vadd.f32 %v2129, %v2256
    %2259 = vrot.lane.b32.xlu0 %v2257, 32
    %v2260 = vpop.permute.xlu0 %2259
    %vm2262 = vcmask 254976
    %v2263 = vsel %vm2262, %v2260, 0.0
    %2264 = vadd.xlane.f32.xlu0 %v2263
    %v2265 = vpop.xlane.xlu0 %2264
    %v2266 = vld [vmem:[#allocation2] sm:$0x1]
    %v2268 = vlaneseq
    %v2269 = vshrl.u32 %v2268, 7
    %v2270 = vsub.s32 0, %v2269
    %v2271 = vrot.slane %v2266, %v2270
    %v2273 = vadd.f32 %v2265, %v2271
    %v2274 = vxor.u32 %v2273, 2147483648
    %v2275 = vmul.f32 %v2274, 1.442695
    %v2276 = vpow.pop %v2275
    %v2277 = vadd.f32 %v2276, 1.0
    %v2278 = vrcp.pop %v2277
    %v2279 = vmul.f32 1.0, %v2278
    %vm2280 = vcmask 1024
    %2281 = vst.msk [vmem:[%s10] sm:$0x3] %vm2280, %v2279
    %v2283 = vrot.slane %v2247, 1
    %2284 = vrot.lane.b32.xlu0 %v2283, 64
    %v2285 = vpop.permute.xlu0 %2284
    %v2287 = vsel %vm180, %v2134, %v2285
    %v2288 = vsel %vm180, %v2136, %v2285
    %vm2289 = vcmask 523271
    %2290 = vst.msk [vmem:[%s11 - $0x7] sm:$0x80] %vm2289, %v2287
    %vm2291 = vcmask 516096
    %2292 = vst.msk [vmem:[%s11 + $0x1] sm:$0x1] %vm2291, %v2288
    %v2295 = vrot.slane %v1997, 7
    %2296 = vrot.lane.b32.xlu0 %v1996, 96
    %v2297 = vpop.permute.xlu0 %2296
    %2298 = vrot.lane.b32.xlu0 %v2295, 96
    %v2299 = vpop.permute.xlu0 %2298
    %v2303 = vrot.slane %v2241, 1
    %v2305 = vsel %vm180, %v2297, %v2303
    %v2306 = vsel %vm180, %v2299, %v2303
    %2307 = vst.msk [vmem:[%s12 - $0x7] sm:$0x80] %vm2289, %v2305
    %2308 = vst.msk [vmem:[%s12 + $0x1] sm:$0x1] %vm2291, %v2306
    // Predicated region
    $region50: #{stock_lstm_forward.1} parent=1 // pred_check
      _
    $region51: #{stock_lstm_forward.1} parent=1 // pred_check_branch
      %2310 = sbr.rel (0) target = $region53
    $region52: #{stock_lstm_forward.1} parent=1 // pred_region
      _
    $region53: #{stock_lstm_forward.1} parent=1 // pred_fallthru
      _
    // Predicated region
    $region54: #{stock_lstm_forward.1} parent=1 // pred_check
      _
    $region55: #{stock_lstm_forward.1} parent=1 // pred_check_branch
      %2312 = sbr.rel (0) target = $region57
    $region56: #{stock_lstm_forward.1} parent=1 // pred_region
      _
    $region57: #{stock_lstm_forward.1} parent=1 // pred_fallthru
      _
    // Predicated region
    $region58: #{stock_lstm_forward.1} parent=1 // pred_check
      _
    $region59: #{stock_lstm_forward.1} parent=1 // pred_check_branch
      %2314 = sbr.rel (0) target = $region61
    $region60: #{stock_lstm_forward.1} parent=1 // pred_region
      _
    $region61: #{stock_lstm_forward.1} parent=1 // pred_fallthru
      _
    // Predicated region
    $region62: #{stock_lstm_forward.1} parent=1 // pred_check
      _
    $region63: #{stock_lstm_forward.1} parent=1 // pred_check_branch
      %2316 = sbr.rel (0) target = $region65
    $region64: #{stock_lstm_forward.1} parent=1 // pred_region
      _
    $region65: #{stock_lstm_forward.1} parent=1 // pred_fallthru
      _
    // Predicated region
    $region66: #{stock_lstm_forward.1} parent=1 // pred_check
      _
    $region67: #{stock_lstm_forward.1} parent=1 // pred_check_branch
      %2318 = sbr.rel (0) target = $region69
    $region68: #{stock_lstm_forward.1} parent=1 // pred_region
      _
    $region69: #{stock_lstm_forward.1} parent=1 // pred_fallthru
      _
    // Predicated region
    $region70: #{stock_lstm_forward.1} parent=1 // pred_check
      _
    $region71: #{stock_lstm_forward.1} parent=1 // pred_check_branch
      %2320 = sbr.rel (0) target = $region73
    $region72: #{stock_lstm_forward.1} parent=1 // pred_region
      _
    $region73: #{stock_lstm_forward.1} parent=1 // pred_fallthru
      _
    %2321 = vsyncpa [#allocation4], 1
    %2322 = vsyncpa [#allocation6], 1

</llo_original>
